<compile_context>
chip_gen: v6e
topology: v6e:2x2x1
jax: 0.10.0
libtpu: 0.0.40
codegen_flags: <defaults>
</compile_context>

<pallas_src>
import functools
import math

import jax
import jax.numpy as jnp
from jax import lax
from jax.experimental import pallas as pl
from jax.experimental.pallas import tpu as pltpu


def _round_up(v, m):
    return (v + m - 1) // m * m


# ----------------------------------------------------------------------------
# Kernel 1: fused spatial residual path (whole batch in one invocation)
#   out = conv3x3(relu(conv3x3(x, W1)), W2) + x + y_fft_branch
# Layout: (N, C) flattened onto sublanes; spatial positions flattened onto
# lanes in "wide row" form (row length Wp = W + 2*pad), so every conv tap is a
# contiguous lane slice and each conv layer is one im2col matmul per batch.
# ----------------------------------------------------------------------------
def spatial_res_kernel(xp_ref, yw_ref, w1_ref, w2_ref, o_ref, zpad_ref, *,
                       N, C, H, W, K, L, S):
    # xp_ref  : (N*C, Le)  zero-padded input, wide rows, interior at lane A
    # yw_ref  : (N*C, L)   FFT-branch output in wide-row layout (junk cols = 0)
    # w*_ref  : (C, C*K*K) im2col weights, column order (kh, kw, cin)
    # o_ref   : (N*C, L)   output in wide-row layout
    # zpad_ref: (N*C, Le)  scratch: zero-padded intermediate activation
    pad = K // 2
    Wp = W + 2 * pad
    Lw = H * Wp
    A = S + pad * Wp + pad                 # 128-aligned interior origin
    Le = zpad_ref.shape[1]
    NC = N * C

    # Valid-lane mask: wide-row junk columns (col % Wp >= W) and the lane tail
    # (col >= Lw) are forced to zero, so re-embedding z writes exact zeros
    # into the horizontal / bottom padding of the intermediate image.
    # (float floor trick == integer col % Wp, avoids vector integer div/mod)
    col = lax.broadcasted_iota(jnp.int32, (1, L), 1)
    colf = col.astype(jnp.float32)
    rowf = jnp.floor((colf + 0.5) * (1.0 / Wp))
    in_row = colf - rowf * Wp
    mask = jnp.where(jnp.logical_and(in_row < W, colf < Lw), 1.0, 0.0)

    w1 = w1_ref[...]
    w2 = w2_ref[...]

    def im2col(ref, n):
        # Stack the K*K shifted slabs of batch n along the contraction axis.
        rows = pl.ds(n * C, C)
        slabs = [ref[rows, pl.ds(S + kh * Wp + kw, L)]
                 for kh in range(K) for kw in range(K)]
        return jnp.concatenate(slabs, axis=0)            # (C*K*K, L)

    # ---- layer 1: z = relu(conv3x3(x, W1)) — one matmul per batch ----------
    zs = [jnp.maximum(jnp.dot(w1, im2col(xp_ref, n),
                              preferred_element_type=jnp.float32), 0.0)
          for n in range(N)]
    z_all = jnp.concatenate(zs, axis=0) * mask            # (N*C, L)

    # ---- re-embed z as a zero-padded wide-row image ------------------------
    # Zero only the never-written border columns (aligned, unmasked stores);
    # the interior [A, A+L) is fully overwritten just below.  Correctness
    # relies on: (a) the interior write covering exactly [A, A+L) every time,
    # (b) the mask having zeroed z's junk columns / lane tail first.
    if A > 0:
        zpad_ref[:, pl.ds(0, A)] = jnp.zeros((NC, A), jnp.float32)
    if Le > A + L:
        zpad_ref[:, pl.ds(A + L, Le - A - L)] = jnp.zeros(
            (NC, Le - A - L), jnp.float32)
    zpad_ref[:, pl.ds(A, L)] = z_all                      # aligned, unmasked

    # ---- layer 2 + both residual adds, single lane-dense store -------------
    ms = [jnp.dot(w2, im2col(zpad_ref, n), preferred_element_type=jnp.float32)
          for n in range(N)]
    m_all = jnp.concatenate(ms, axis=0)                   # (N*C, L)
    o_ref[...] = (m_all + xp_ref[:, pl.ds(A, L)]
                  + yw_ref[...]).astype(o_ref.dtype)


def spatial_res_pallas(x, y, dow1, dow2):
    """x, y: (N, C, H, W) f32.  Returns conv2(relu(conv1(x))) + x + y."""
    N, C, H, W = x.shape
    K = dow1.shape[-1]
    pad = K // 2
    Wp = W + 2 * pad
    Hp = H + 2 * pad
    Lw = H * Wp
    L = _round_up(Lw, 128)                    # lane-dense working width
    interior = pad * Wp + pad
    S = (-interior) % 128                     # shift so interior is 128-aligned
    A = S + interior
    max_off = S + (K - 1) * Wp + (K - 1)      # start of the last tap slab
    Le = _round_up(max(max_off + L, A + L), 128)
    NC = N * C

    # TODO(synk): these pads + the final strip are extra HBM passes at
    # realistic sizes — build the wide-row layout inside the kernel instead.
    xp = jnp.pad(x, ((0, 0), (0, 0), (pad, pad), (pad, pad)))
    xp = xp.reshape(NC, Hp * Wp)
    xp = jnp.pad(xp, ((0, 0), (S, Le - S - Hp * Wp)))

    yw = jnp.pad(y, ((0, 0), (0, 0), (0, 0), (0, 2 * pad))).reshape(NC, Lw)
    yw = jnp.pad(yw, ((0, 0), (0, L - Lw)))

    # (O, I, K, K) -> (O, K*K*I): contraction index = (kh*K + kw)*C + cin
    w1 = jnp.transpose(dow1, (0, 2, 3, 1)).reshape(C, K * K * C)
    w2 = jnp.transpose(dow2, (0, 2, 3, 1)).reshape(C, K * K * C)

    kernel = functools.partial(spatial_res_kernel,
                               N=N, C=C, H=H, W=W, K=K, L=L, S=S)
    out_wide = pl.pallas_call(
        kernel,
        out_shape=jax.ShapeDtypeStruct((NC, L), jnp.float32),
        grid=(1,),
        in_specs=[
            pl.BlockSpec((NC, Le), lambda i: (0, 0)),
            pl.BlockSpec((NC, L), lambda i: (0, 0)),
            pl.BlockSpec((C, K * K * C), lambda i: (0, 0)),
            pl.BlockSpec((C, K * K * C), lambda i: (0, 0)),
        ],
        out_specs=pl.BlockSpec((NC, L), lambda i: (0, 0)),
        scratch_shapes=[pltpu.VMEM((NC, Le), jnp.float32)],
        compiler_params=pltpu.CompilerParams(
            dimension_semantics=("arbitrary",)),
    )(xp, yw, w1, w2)

    # strip the wide-row junk columns and the lane tail
    return out_wide[:, :Lw].reshape(N, C, H, Wp)[:, :, :, :W]


# ----------------------------------------------------------------------------
# Kernel 2: fused main_fft (1x1 conv + ReLU + 1x1 conv) on the stacked spectrum
# Real/imag arrive as two separate inputs; channel stacking on sublanes is done
# in-kernel, avoiding an HBM-side concatenate.  Whole batch in one invocation.
# ----------------------------------------------------------------------------
def freq_conv_kernel(yr_ref, yi_ref, w1_ref, w2_ref, or_ref, oi_ref, *, N, C):
    w1 = w1_ref[...]
    w2 = w2_ref[...]
    yr = yr_ref[...]
    yi = yi_ref[...]
    outs_r, outs_i = [], []
    for n in range(N):
        ycat = jnp.concatenate([yr[n * C:(n + 1) * C],
                                yi[n * C:(n + 1) * C]], axis=0)   # (2C, Lf)
        z = jnp.maximum(jnp.dot(w1, ycat,
                                preferred_element_type=jnp.float32), 0.0)
        o = jnp.dot(w2, z, preferred_element_type=jnp.float32)
        outs_r.append(o[:C])
        outs_i.append(o[C:])
    or_ref[...] = jnp.concatenate(outs_r, axis=0).astype(or_ref.dtype)
    oi_ref[...] = jnp.concatenate(outs_i, axis=0).astype(oi_ref.dtype)


def main_fft_pallas(yr, yi, w1, w2, N, C):
    NC, Lf = yr.shape
    kernel = functools.partial(freq_conv_kernel, N=N, C=C)
    return pl.pallas_call(
        kernel,
        out_shape=(jax.ShapeDtypeStruct((NC, Lf), jnp.float32),
                   jax.ShapeDtypeStruct((NC, Lf), jnp.float32)),
        grid=(1,),
        in_specs=[
            pl.BlockSpec((NC, Lf), lambda i: (0, 0)),
            pl.BlockSpec((NC, Lf), lambda i: (0, 0)),
            pl.BlockSpec((2 * C, 2 * C), lambda i: (0, 0)),
            pl.BlockSpec((2 * C, 2 * C), lambda i: (0, 0)),
        ],
        out_specs=(pl.BlockSpec((NC, Lf), lambda i: (0, 0)),
                   pl.BlockSpec((NC, Lf), lambda i: (0, 0))),
        compiler_params=pltpu.CompilerParams(
            dimension_semantics=("arbitrary",)),
    )(yr, yi, w1, w2)


# ----------------------------------------------------------------------------
# Full ResBlock_do_fft_bench forward
# ----------------------------------------------------------------------------
def resblock_do_fft_bench_forward(x, dow1, dow2, w1_fft, w2_fft):
    N, C, H, W = x.shape
    # --- frequency branch: rfft2 -> [1x1 conv + ReLU, 1x1 conv] -> irfft2 ---
    # TODO(synk): rfft2/irfft2 stay in XLA — there is no Pallas FFT primitive.
    yf = jnp.fft.rfft2(x, axes=(-2, -1), norm='backward')
    Wf = yf.shape[-1]
    Lf = H * Wf
    Lfp = _round_up(Lf, 128)
    yr = jnp.real(yf).astype(jnp.float32).reshape(N * C, Lf)
    yi = jnp.imag(yf).astype(jnp.float32).reshape(N * C, Lf)
    yr = jnp.pad(yr, ((0, 0), (0, Lfp - Lf)))
    yi = jnp.pad(yi, ((0, 0), (0, Lfp - Lf)))
    o_r, o_i = main_fft_pallas(yr, yi, w1_fft, w2_fft, N, C)
    y_c = (o_r[:, :Lf] + 1j * o_i[:, :Lf]).reshape(N, C, H, Wf)
    y_spat = jnp.fft.irfft2(y_c, s=(H, W), axes=(-2, -1),
                            norm='backward').astype(jnp.float32)
    # --- spatial branch + both residual adds, fused in one kernel -----------
    return spatial_res_pallas(x, y_spat, dow1, dow2)


# ----------------------------------------------------------------------------
# DOConv2d (bias=False, groups=1) effective weight construction
# ----------------------------------------------------------------------------
def make_doconv_weight(key, in_ch, out_ch, k):
    d_mul = k * k
    bound = 1.0 / math.sqrt(in_ch * d_mul)     # kaiming_uniform_(a=sqrt(5))
    Wparam = jax.random.uniform(key, (out_ch, in_ch, d_mul), jnp.float32,
                                minval=-bound, maxval=bound)
    if d_mul > 1:
        D = jnp.zeros((in_ch, k * k, d_mul), jnp.float32)          # D init = 0
        D_diag = jnp.tile(jnp.eye(k * k, dtype=jnp.float32)[None],
                          (in_ch, 1, d_mul // (k * k)))
        DoW = jnp.einsum('ims,ois->oim', D + D_diag, Wparam)
        return jnp.reshape(DoW, (out_ch, in_ch, k, k))
    return jnp.reshape(Wparam, (out_ch, in_ch, k, k))


# ----------------------------------------------------------------------------
if __name__ == "__main__":
    key = jax.random.PRNGKey(0)
    kx, k1, k2, k3, k4 = jax.random.split(key, 5)

    batch, C, H, W = 2, 4, 16, 16
    x = jax.random.normal(kx, (batch, C, H, W), jnp.float32)

    dow1 = make_doconv_weight(k1, C, C, 3)                       # main[0] 3x3
    dow2 = make_doconv_weight(k2, C, C, 3)                       # main[1] 3x3
    w1f = make_doconv_weight(k3, 2 * C, 2 * C, 1)[:, :, 0, 0]    # main_fft[0] 1x1
    w2f = make_doconv_weight(k4, 2 * C, 2 * C, 1)[:, :, 0, 0]    # main_fft[1] 1x1

    fwd = jax.jit(resblock_do_fft_bench_forward)
    out = jax.block_until_ready(fwd(x, dow1, dow2, w1f, w2f))

    # ---- pure-XLA reference with identical semantics ----
    def conv(v, w, p):
        return lax.conv_general_dilated(
            v, w, (1, 1), ((p, p), (p, p)),
            dimension_numbers=('NCHW', 'OIHW', 'NCHW'),
            precision=lax.Precision.HIGHEST)

    main = conv(jnp.maximum(conv(x, dow1, 1), 0.0), dow2, 1)
    yf = jnp.fft.rfft2(x, axes=(-2, -1), norm='backward')
    y_cat = jnp.concatenate([yf.real, yf.imag], axis=1)
    y_cat = conv(jnp.maximum(conv(y_cat, w1f[:, :, None, None], 0), 0.0),
                 w2f[:, :, None, None], 0)
    yr, yi = jnp.split(y_cat, 2, axis=1)
    y_ref = jnp.fft.irfft2(yr + 1j * yi, s=(H, W), axes=(-2, -1),
                           norm='backward')
    ref = main + x + y_ref

    assert out.shape == (batch, C, H, W)
    err = float(jnp.max(jnp.abs(out - ref)))
    # f32 MXU matmul (multi-pass) vs lax.Precision.HIGHEST reference
    assert jnp.allclose(out, ref, atol=2e-3, rtol=2e-3), err

    print("KERNEL_OK")
</pallas_src>

<mosaic_0001>
module attributes {stable_mosaic.version = 11 : i64} {
  func.func @freq_conv_kernel(%arg0: i32, %arg1: memref<8x256xf32, #tpu.memory_space<vmem>>, %arg2: memref<8x256xf32, #tpu.memory_space<vmem>>, %arg3: memref<8x8xf32, #tpu.memory_space<vmem>>, %arg4: memref<8x8xf32, #tpu.memory_space<vmem>>, %arg5: memref<8x256xf32, #tpu.memory_space<vmem>>, %arg6: memref<8x256xf32, #tpu.memory_space<vmem>>) attributes {dimension_semantics = [#tpu.dimension_semantics<arbitrary>], iteration_bounds = array<i64: 1>, scalar_prefetch = 0 : i64, scratch_operands = 0 : i64, tpu.core_type = #tpu.core_type<tc>, window_params = [{pipeline_mode = #tpu.pipeline_mode<synchronous>, transform_indices = @transform_0, window_bounds = array<i64: 8, 256>}, {pipeline_mode = #tpu.pipeline_mode<synchronous>, transform_indices = @transform_1, window_bounds = array<i64: 8, 256>}, {pipeline_mode = #tpu.pipeline_mode<synchronous>, transform_indices = @transform_2, window_bounds = array<i64: 8, 8>}, {pipeline_mode = #tpu.pipeline_mode<synchronous>, transform_indices = @transform_3, window_bounds = array<i64: 8, 8>}, {pipeline_mode = #tpu.pipeline_mode<synchronous>, transform_indices = @transform_4, window_bounds = array<i64: 8, 256>}, {pipeline_mode = #tpu.pipeline_mode<synchronous>, transform_indices = @transform_5, window_bounds = array<i64: 8, 256>}]} {
    %c0 = arith.constant 0 : index
    %c0_0 = arith.constant 0 : index
    %0 = vector.load %arg3[%c0, %c0_0] : memref<8x8xf32, #tpu.memory_space<vmem>>, vector<8x8xf32>
    %c0_1 = arith.constant 0 : index
    %c0_2 = arith.constant 0 : index
    %1 = vector.load %arg4[%c0_1, %c0_2] : memref<8x8xf32, #tpu.memory_space<vmem>>, vector<8x8xf32>
    %c0_3 = arith.constant 0 : index
    %c0_4 = arith.constant 0 : index
    %2 = vector.load %arg1[%c0_3, %c0_4] : memref<8x256xf32, #tpu.memory_space<vmem>>, vector<8x256xf32>
    %c0_5 = arith.constant 0 : index
    %c0_6 = arith.constant 0 : index
    %3 = vector.load %arg2[%c0_5, %c0_6] : memref<8x256xf32, #tpu.memory_space<vmem>>, vector<8x256xf32>
    %4 = vector.extract_strided_slice %2 {offsets = [0, 0], sizes = [4, 256], strides = [1, 1]} : vector<8x256xf32> to vector<4x256xf32>
    %5 = vector.extract_strided_slice %3 {offsets = [0, 0], sizes = [4, 256], strides = [1, 1]} : vector<8x256xf32> to vector<4x256xf32>
    %6 = tpu.concatenate %4, %5 in 0 : vector<4x256xf32>, vector<4x256xf32> -> vector<8x256xf32>
    %cst = arith.constant dense<0.000000e+00> : vector<8x256xf32>
    %7 = tpu.matmul %0, %6, %cst {dimension_numbers = #tpu.dot_dimension_numbers<[1], [0], [0], [1], [0, 0, 1, 1], [], []>} : vector<8x8xf32>, vector<8x256xf32>, vector<8x256xf32> -> vector<8x256xf32>
    %cst_7 = arith.constant 0.000000e+00 : f32
    %8 = vector.broadcast %cst_7 : f32 to vector<8x256xf32>
    %9 = arith.maximumf %7, %8 : vector<8x256xf32>
    %cst_8 = arith.constant dense<0.000000e+00> : vector<8x256xf32>
    %10 = tpu.matmul %1, %9, %cst_8 {dimension_numbers = #tpu.dot_dimension_numbers<[1], [0], [0], [1], [0, 0, 1, 1], [], []>} : vector<8x8xf32>, vector<8x256xf32>, vector<8x256xf32> -> vector<8x256xf32>
    %11 = vector.extract_strided_slice %10 {offsets = [0, 0], sizes = [4, 256], strides = [1, 1]} : vector<8x256xf32> to vector<4x256xf32>
    %12 = vector.extract_strided_slice %10 {offsets = [4, 0], sizes = [4, 256], strides = [1, 1]} : vector<8x256xf32> to vector<4x256xf32>
    %13 = vector.extract_strided_slice %2 {offsets = [4, 0], sizes = [4, 256], strides = [1, 1]} : vector<8x256xf32> to vector<4x256xf32>
    %14 = vector.extract_strided_slice %3 {offsets = [4, 0], sizes = [4, 256], strides = [1, 1]} : vector<8x256xf32> to vector<4x256xf32>
    %15 = tpu.concatenate %13, %14 in 0 : vector<4x256xf32>, vector<4x256xf32> -> vector<8x256xf32>
    %cst_9 = arith.constant dense<0.000000e+00> : vector<8x256xf32>
    %16 = tpu.matmul %0, %15, %cst_9 {dimension_numbers = #tpu.dot_dimension_numbers<[1], [0], [0], [1], [0, 0, 1, 1], [], []>} : vector<8x8xf32>, vector<8x256xf32>, vector<8x256xf32> -> vector<8x256xf32>
    %cst_10 = arith.constant 0.000000e+00 : f32
    %17 = vector.broadcast %cst_10 : f32 to vector<8x256xf32>
    %18 = arith.maximumf %16, %17 : vector<8x256xf32>
    %cst_11 = arith.constant dense<0.000000e+00> : vector<8x256xf32>
    %19 = tpu.matmul %1, %18, %cst_11 {dimension_numbers = #tpu.dot_dimension_numbers<[1], [0], [0], [1], [0, 0, 1, 1], [], []>} : vector<8x8xf32>, vector<8x256xf32>, vector<8x256xf32> -> vector<8x256xf32>
    %20 = vector.extract_strided_slice %19 {offsets = [0, 0], sizes = [4, 256], strides = [1, 1]} : vector<8x256xf32> to vector<4x256xf32>
    %21 = vector.extract_strided_slice %19 {offsets = [4, 0], sizes = [4, 256], strides = [1, 1]} : vector<8x256xf32> to vector<4x256xf32>
    %22 = tpu.concatenate %11, %20 in 0 : vector<4x256xf32>, vector<4x256xf32> -> vector<8x256xf32>
    %c0_12 = arith.constant 0 : index
    %c0_13 = arith.constant 0 : index
    %23 = vector.load %arg5[%c0_12, %c0_13] : memref<8x256xf32, #tpu.memory_space<vmem>>, vector<8x256xf32>
    tpu.vector_store %arg5[%c0_12, %c0_13], %22 {strides = array<i32>} : memref<8x256xf32, #tpu.memory_space<vmem>>, vector<8x256xf32>,
    %24 = tpu.concatenate %12, %21 in 0 : vector<4x256xf32>, vector<4x256xf32> -> vector<8x256xf32>
    %c0_14 = arith.constant 0 : index
    %c0_15 = arith.constant 0 : index
    %25 = vector.load %arg6[%c0_14, %c0_15] : memref<8x256xf32, #tpu.memory_space<vmem>>, vector<8x256xf32>
    tpu.vector_store %arg6[%c0_14, %c0_15], %24 {strides = array<i32>} : memref<8x256xf32, #tpu.memory_space<vmem>>, vector<8x256xf32>,
    return
  }
  func.func @transform_0(%arg0: i32) -> (i32, i32) {
    %c0_i32 = arith.constant 0 : i32
    %c0_i32_0 = arith.constant 0 : i32
    %c0_i32_1 = arith.constant 0 : i32
    return %c0_i32, %c0_i32_0 : i32, i32
  }
  func.func @transform_1(%arg0: i32) -> (i32, i32) {
    %c0_i32 = arith.constant 0 : i32
    %c0_i32_0 = arith.constant 0 : i32
    %c0_i32_1 = arith.constant 0 : i32
    return %c0_i32, %c0_i32_0 : i32, i32
  }
  func.func @transform_2(%arg0: i32) -> (i32, i32) {
    %c0_i32 = arith.constant 0 : i32
    %c0_i32_0 = arith.constant 0 : i32
    %c0_i32_1 = arith.constant 0 : i32
    return %c0_i32, %c0_i32_0 : i32, i32
  }
  func.func @transform_3(%arg0: i32) -> (i32, i32) {
    %c0_i32 = arith.constant 0 : i32
    %c0_i32_0 = arith.constant 0 : i32
    %c0_i32_1 = arith.constant 0 : i32
    return %c0_i32, %c0_i32_0 : i32, i32
  }
  func.func @transform_4(%arg0: i32) -> (i32, i32) {
    %c0_i32 = arith.constant 0 : i32
    %c0_i32_0 = arith.constant 0 : i32
    %c0_i32_1 = arith.constant 0 : i32
    return %c0_i32, %c0_i32_0 : i32, i32
  }
  func.func @transform_5(%arg0: i32) -> (i32, i32) {
    %c0_i32 = arith.constant 0 : i32
    %c0_i32_0 = arith.constant 0 : i32
    %c0_i32_1 = arith.constant 0 : i32
    return %c0_i32, %c0_i32_0 : i32, i32
  }
}

module attributes {stable_mosaic.version = 11 : i64} {
  func.func @spatial_res_kernel(%arg0: i32, %arg1: memref<8x640xf32, #tpu.memory_space<vmem>>, %arg2: memref<8x384xf32, #tpu.memory_space<vmem>>, %arg3: memref<4x36xf32, #tpu.memory_space<vmem>>, %arg4: memref<4x36xf32, #tpu.memory_space<vmem>>, %arg5: memref<8x384xf32, #tpu.memory_space<vmem>>, %arg6: memref<8x640xf32, #tpu.memory_space<vmem>>) attributes {dimension_semantics = [#tpu.dimension_semantics<arbitrary>], iteration_bounds = array<i64: 1>, scalar_prefetch = 0 : i64, scratch_operands = 1 : i64, tpu.core_type = #tpu.core_type<tc>, window_params = [{pipeline_mode = #tpu.pipeline_mode<synchronous>, transform_indices = @transform_0, window_bounds = array<i64: 8, 640>}, {pipeline_mode = #tpu.pipeline_mode<synchronous>, transform_indices = @transform_1, window_bounds = array<i64: 8, 384>}, {pipeline_mode = #tpu.pipeline_mode<synchronous>, transform_indices = @transform_2, window_bounds = array<i64: 4, 36>}, {pipeline_mode = #tpu.pipeline_mode<synchronous>, transform_indices = @transform_3, window_bounds = array<i64: 4, 36>}, {pipeline_mode = #tpu.pipeline_mode<synchronous>, transform_indices = @transform_4, window_bounds = array<i64: 8, 384>}]} {
    %0 = tpu.iota {dimensions = array<i32: 1>} : vector<1x384xi32>
    %1 = arith.sitofp %0 : vector<1x384xi32> to vector<1x384xf32>
    %cst = arith.constant 5.000000e-01 : f32
    %2 = vector.broadcast %cst : f32 to vector<1x384xf32>
    %3 = arith.addf %1, %2 : vector<1x384xf32>
    %cst_0 = arith.constant 0.055555556 : f32
    %4 = vector.broadcast %cst_0 : f32 to vector<1x384xf32>
    %5 = arith.mulf %3, %4 : vector<1x384xf32>
    %6 = math.floor %5 : vector<1x384xf32>
    %cst_1 = arith.constant 1.800000e+01 : f32
    %7 = vector.broadcast %cst_1 : f32 to vector<1x384xf32>
    %8 = arith.mulf %6, %7 : vector<1x384xf32>
    %9 = arith.subf %1, %8 : vector<1x384xf32>
    %cst_2 = arith.constant 1.600000e+01 : f32
    %10 = vector.broadcast %cst_2 : f32 to vector<1x384xf32>
    %11 = arith.cmpf olt, %9, %10 : vector<1x384xf32>
    %cst_3 = arith.constant 2.880000e+02 : f32
    %12 = vector.broadcast %cst_3 : f32 to vector<1x384xf32>
    %13 = arith.cmpf olt, %1, %12 : vector<1x384xf32>
    %14 = arith.andi %11, %13 : vector<1x384xi1>
    %cst_4 = arith.constant 1.000000e+00 : f32
    %cst_5 = arith.constant 0.000000e+00 : f32
    %15 = vector.broadcast %cst_4 : f32 to vector<1x384xf32>
    %16 = vector.broadcast %cst_5 : f32 to vector<1x384xf32>
    %17 = arith.select %14, %15, %16 : vector<1x384xi1>, vector<1x384xf32>
    %c0 = arith.constant 0 : index
    %c0_6 = arith.constant 0 : index
    %18 = vector.load %arg3[%c0, %c0_6] : memref<4x36xf32, #tpu.memory_space<vmem>>, vector<4x36xf32>
    %c0_7 = arith.constant 0 : index
    %c0_8 = arith.constant 0 : index
    %19 = vector.load %arg4[%c0_7, %c0_8] : memref<4x36xf32, #tpu.memory_space<vmem>>, vector<4x36xf32>
    %c0_9 = arith.constant 0 : index
    %c109 = arith.constant 109 : index
    %20 = vector.load %arg1[%c0_9, %c109] : memref<8x640xf32, #tpu.memory_space<vmem>>, vector<4x384xf32>
    %c0_10 = arith.constant 0 : index
    %c110 = arith.constant 110 : index
    %21 = vector.load %arg1[%c0_10, %c110] : memref<8x640xf32, #tpu.memory_space<vmem>>, vector<4x384xf32>
    %c0_11 = arith.constant 0 : index
    %c111 = arith.constant 111 : index
    %22 = vector.load %arg1[%c0_11, %c111] : memref<8x640xf32, #tpu.memory_space<vmem>>, vector<4x384xf32>
    %c0_12 = arith.constant 0 : index
    %c127 = arith.constant 127 : index
    %23 = vector.load %arg1[%c0_12, %c127] : memref<8x640xf32, #tpu.memory_space<vmem>>, vector<4x384xf32>
    %c0_13 = arith.constant 0 : index
    %c128 = arith.constant 128 : index
    %24 = vector.load %arg1[%c0_13, %c128] : memref<8x640xf32, #tpu.memory_space<vmem>>, vector<4x384xf32>
    %c0_14 = arith.constant 0 : index
    %c129 = arith.constant 129 : index
    %25 = vector.load %arg1[%c0_14, %c129] : memref<8x640xf32, #tpu.memory_space<vmem>>, vector<4x384xf32>
    %c0_15 = arith.constant 0 : index
    %c145 = arith.constant 145 : index
    %26 = vector.load %arg1[%c0_15, %c145] : memref<8x640xf32, #tpu.memory_space<vmem>>, vector<4x384xf32>
    %c0_16 = arith.constant 0 : index
    %c146 = arith.constant 146 : index
    %27 = vector.load %arg1[%c0_16, %c146] : memref<8x640xf32, #tpu.memory_space<vmem>>, vector<4x384xf32>
    %c0_17 = arith.constant 0 : index
    %c147 = arith.constant 147 : index
    %28 = vector.load %arg1[%c0_17, %c147] : memref<8x640xf32, #tpu.memory_space<vmem>>, vector<4x384xf32>
    %29 = tpu.concatenate %20, %21, %22, %23, %24, %25, %26, %27, %28 in 0 : vector<4x384xf32>, vector<4x384xf32>, vector<4x384xf32>, vector<4x384xf32>, vector<4x384xf32>, vector<4x384xf32>, vector<4x384xf32>, vector<4x384xf32>, vector<4x384xf32> -> vector<36x384xf32>
    %cst_18 = arith.constant dense<0.000000e+00> : vector<4x384xf32>
    %30 = tpu.matmul %18, %29, %cst_18 {dimension_numbers = #tpu.dot_dimension_numbers<[1], [0], [0], [1], [0, 0, 1, 1], [], []>} : vector<4x36xf32>, vector<36x384xf32>, vector<4x384xf32> -> vector<4x384xf32>
    %cst_19 = arith.constant 0.000000e+00 : f32
    %31 = vector.broadcast %cst_19 : f32 to vector<4x384xf32>
    %32 = arith.maximumf %30, %31 : vector<4x384xf32>
    %c4 = arith.constant 4 : index
    %c109_20 = arith.constant 109 : index
    %33 = vector.load %arg1[%c4, %c109_20] : memref<8x640xf32, #tpu.memory_space<vmem>>, vector<4x384xf32>
    %c4_21 = arith.constant 4 : index
    %c110_22 = arith.constant 110 : index
    %34 = vector.load %arg1[%c4_21, %c110_22] : memref<8x640xf32, #tpu.memory_space<vmem>>, vector<4x384xf32>
    %c4_23 = arith.constant 4 : index
    %c111_24 = arith.constant 111 : index
    %35 = vector.load %arg1[%c4_23, %c111_24] : memref<8x640xf32, #tpu.memory_space<vmem>>, vector<4x384xf32>
    %c4_25 = arith.constant 4 : index
    %c127_26 = arith.constant 127 : index
    %36 = vector.load %arg1[%c4_25, %c127_26] : memref<8x640xf32, #tpu.memory_space<vmem>>, vector<4x384xf32>
    %c4_27 = arith.constant 4 : index
    %c128_28 = arith.constant 128 : index
    %37 = vector.load %arg1[%c4_27, %c128_28] : memref<8x640xf32, #tpu.memory_space<vmem>>, vector<4x384xf32>
    %c4_29 = arith.constant 4 : index
    %c129_30 = arith.constant 129 : index
    %38 = vector.load %arg1[%c4_29, %c129_30] : memref<8x640xf32, #tpu.memory_space<vmem>>, vector<4x384xf32>
    %c4_31 = arith.constant 4 : index
    %c145_32 = arith.constant 145 : index
    %39 = vector.load %arg1[%c4_31, %c145_32] : memref<8x640xf32, #tpu.memory_space<vmem>>, vector<4x384xf32>
    %c4_33 = arith.constant 4 : index
    %c146_34 = arith.constant 146 : index
    %40 = vector.load %arg1[%c4_33, %c146_34] : memref<8x640xf32, #tpu.memory_space<vmem>>, vector<4x384xf32>
    %c4_35 = arith.constant 4 : index
    %c147_36 = arith.constant 147 : index
    %41 = vector.load %arg1[%c4_35, %c147_36] : memref<8x640xf32, #tpu.memory_space<vmem>>, vector<4x384xf32>
    %42 = tpu.concatenate %33, %34, %35, %36, %37, %38, %39, %40, %41 in 0 : vector<4x384xf32>, vector<4x384xf32>, vector<4x384xf32>, vector<4x384xf32>, vector<4x384xf32>, vector<4x384xf32>, vector<4x384xf32>, vector<4x384xf32>, vector<4x384xf32> -> vector<36x384xf32>
    %cst_37 = arith.constant dense<0.000000e+00> : vector<4x384xf32>
    %43 = tpu.matmul %18, %42, %cst_37 {dimension_numbers = #tpu.dot_dimension_numbers<[1], [0], [0], [1], [0, 0, 1, 1], [], []>} : vector<4x36xf32>, vector<36x384xf32>, vector<4x384xf32> -> vector<4x384xf32>
    %cst_38 = arith.constant 0.000000e+00 : f32
    %44 = vector.broadcast %cst_38 : f32 to vector<4x384xf32>
    %45 = arith.maximumf %43, %44 : vector<4x384xf32>
    %46 = tpu.concatenate %32, %45 in 0 : vector<4x384xf32>, vector<4x384xf32> -> vector<8x384xf32>
    %47 = vector.broadcast %17 : vector<1x384xf32> to vector<8x384xf32>
    %48 = arith.mulf %46, %47 : vector<8x384xf32>
    %cst_39 = arith.constant 0.000000e+00 : f32
    %49 = vector.broadcast %cst_39 : f32 to vector<8x128xf32>
    %c0_40 = arith.constant 0 : index
    %c0_41 = arith.constant 0 : index
    %50 = vector.load %arg6[%c0_40, %c0_41] : memref<8x640xf32, #tpu.memory_space<vmem>>, vector<8x128xf32>
    tpu.vector_store %arg6[%c0_40, %c0_41], %49 {strides = array<i32>} : memref<8x640xf32, #tpu.memory_space<vmem>>, vector<8x128xf32>,
    %cst_42 = arith.constant 0.000000e+00 : f32
    %51 = vector.broadcast %cst_42 : f32 to vector<8x128xf32>
    %c0_43 = arith.constant 0 : index
    %c512 = arith.constant 512 : index
    %52 = vector.load %arg6[%c0_43, %c512] : memref<8x640xf32, #tpu.memory_space<vmem>>, vector<8x128xf32>
    tpu.vector_store %arg6[%c0_43, %c512], %51 {strides = array<i32>} : memref<8x640xf32, #tpu.memory_space<vmem>>, vector<8x128xf32>,
    %c0_44 = arith.constant 0 : index
    %c128_45 = arith.constant 128 : index
    %53 = vector.load %arg6[%c0_44, %c128_45] : memref<8x640xf32, #tpu.memory_space<vmem>>, vector<8x384xf32>
    tpu.vector_store %arg6[%c0_44, %c128_45], %48 {strides = array<i32>} : memref<8x640xf32, #tpu.memory_space<vmem>>, vector<8x384xf32>,
    %c0_46 = arith.constant 0 : index
    %c109_47 = arith.constant 109 : index
    %54 = vector.load %arg6[%c0_46, %c109_47] : memref<8x640xf32, #tpu.memory_space<vmem>>, vector<4x384xf32>
    %c0_48 = arith.constant 0 : index
    %c110_49 = arith.constant 110 : index
    %55 = vector.load %arg6[%c0_48, %c110_49] : memref<8x640xf32, #tpu.memory_space<vmem>>, vector<4x384xf32>
    %c0_50 = arith.constant 0 : index
    %c111_51 = arith.constant 111 : index
    %56 = vector.load %arg6[%c0_50, %c111_51] : memref<8x640xf32, #tpu.memory_space<vmem>>, vector<4x384xf32>
    %c0_52 = arith.constant 0 : index
    %c127_53 = arith.constant 127 : index
    %57 = vector.load %arg6[%c0_52, %c127_53] : memref<8x640xf32, #tpu.memory_space<vmem>>, vector<4x384xf32>
    %c0_54 = arith.constant 0 : index
    %c128_55 = arith.constant 128 : index
    %58 = vector.load %arg6[%c0_54, %c128_55] : memref<8x640xf32, #tpu.memory_space<vmem>>, vector<4x384xf32>
    %c0_56 = arith.constant 0 : index
    %c129_57 = arith.constant 129 : index
    %59 = vector.load %arg6[%c0_56, %c129_57] : memref<8x640xf32, #tpu.memory_space<vmem>>, vector<4x384xf32>
    %c0_58 = arith.constant 0 : index
    %c145_59 = arith.constant 145 : index
    %60 = vector.load %arg6[%c0_58, %c145_59] : memref<8x640xf32, #tpu.memory_space<vmem>>, vector<4x384xf32>
    %c0_60 = arith.constant 0 : index
    %c146_61 = arith.constant 146 : index
    %61 = vector.load %arg6[%c0_60, %c146_61] : memref<8x640xf32, #tpu.memory_space<vmem>>, vector<4x384xf32>
    %c0_62 = arith.constant 0 : index
    %c147_63 = arith.constant 147 : index
    %62 = vector.load %arg6[%c0_62, %c147_63] : memref<8x640xf32, #tpu.memory_space<vmem>>, vector<4x384xf32>
    %63 = tpu.concatenate %54, %55, %56, %57, %58, %59, %60, %61, %62 in 0 : vector<4x384xf32>, vector<4x384xf32>, vector<4x384xf32>, vector<4x384xf32>, vector<4x384xf32>, vector<4x384xf32>, vector<4x384xf32>, vector<4x384xf32>, vector<4x384xf32> -> vector<36x384xf32>
    %cst_64 = arith.constant dense<0.000000e+00> : vector<4x384xf32>
    %64 = tpu.matmul %19, %63, %cst_64 {dimension_numbers = #tpu.dot_dimension_numbers<[1], [0], [0], [1], [0, 0, 1, 1], [], []>} : vector<4x36xf32>, vector<36x384xf32>, vector<4x384xf32> -> vector<4x384xf32>
    %c4_65 = arith.constant 4 : index
    %c109_66 = arith.constant 109 : index
    %65 = vector.load %arg6[%c4_65, %c109_66] : memref<8x640xf32, #tpu.memory_space<vmem>>, vector<4x384xf32>
    %c4_67 = arith.constant 4 : index
    %c110_68 = arith.constant 110 : index
    %66 = vector.load %arg6[%c4_67, %c110_68] : memref<8x640xf32, #tpu.memory_space<vmem>>, vector<4x384xf32>
    %c4_69 = arith.constant 4 : index
    %c111_70 = arith.constant 111 : index
    %67 = vector.load %arg6[%c4_69, %c111_70] : memref<8x640xf32, #tpu.memory_space<vmem>>, vector<4x384xf32>
    %c4_71 = arith.constant 4 : index
    %c127_72 = arith.constant 127 : index
    %68 = vector.load %arg6[%c4_71, %c127_72] : memref<8x640xf32, #tpu.memory_space<vmem>>, vector<4x384xf32>
    %c4_73 = arith.constant 4 : index
    %c128_74 = arith.constant 128 : index
    %69 = vector.load %arg6[%c4_73, %c128_74] : memref<8x640xf32, #tpu.memory_space<vmem>>, vector<4x384xf32>
    %c4_75 = arith.constant 4 : index
    %c129_76 = arith.constant 129 : index
    %70 = vector.load %arg6[%c4_75, %c129_76] : memref<8x640xf32, #tpu.memory_space<vmem>>, vector<4x384xf32>
    %c4_77 = arith.constant 4 : index
    %c145_78 = arith.constant 145 : index
    %71 = vector.load %arg6[%c4_77, %c145_78] : memref<8x640xf32, #tpu.memory_space<vmem>>, vector<4x384xf32>
    %c4_79 = arith.constant 4 : index
    %c146_80 = arith.constant 146 : index
    %72 = vector.load %arg6[%c4_79, %c146_80] : memref<8x640xf32, #tpu.memory_space<vmem>>, vector<4x384xf32>
    %c4_81 = arith.constant 4 : index
    %c147_82 = arith.constant 147 : index
    %73 = vector.load %arg6[%c4_81, %c147_82] : memref<8x640xf32, #tpu.memory_space<vmem>>, vector<4x384xf32>
    %74 = tpu.concatenate %65, %66, %67, %68, %69, %70, %71, %72, %73 in 0 : vector<4x384xf32>, vector<4x384xf32>, vector<4x384xf32>, vector<4x384xf32>, vector<4x384xf32>, vector<4x384xf32>, vector<4x384xf32>, vector<4x384xf32>, vector<4x384xf32> -> vector<36x384xf32>
    %cst_83 = arith.constant dense<0.000000e+00> : vector<4x384xf32>
    %75 = tpu.matmul %19, %74, %cst_83 {dimension_numbers = #tpu.dot_dimension_numbers<[1], [0], [0], [1], [0, 0, 1, 1], [], []>} : vector<4x36xf32>, vector<36x384xf32>, vector<4x384xf32> -> vector<4x384xf32>
    %76 = tpu.concatenate %64, %75 in 0 : vector<4x384xf32>, vector<4x384xf32> -> vector<8x384xf32>
    %c0_84 = arith.constant 0 : index
    %c128_85 = arith.constant 128 : index
    %77 = vector.load %arg1[%c0_84, %c128_85] : memref<8x640xf32, #tpu.memory_space<vmem>>, vector<8x384xf32>
    %78 = arith.addf %76, %77 : vector<8x384xf32>
    %c0_86 = arith.constant 0 : index
    %c0_87 = arith.constant 0 : index
    %79 = vector.load %arg2[%c0_86, %c0_87] : memref<8x384xf32, #tpu.memory_space<vmem>>, vector<8x384xf32>
    %80 = arith.addf %78, %79 : vector<8x384xf32>
    %c0_88 = arith.constant 0 : index
    %c0_89 = arith.constant 0 : index
    %81 = vector.load %arg5[%c0_88, %c0_89] : memref<8x384xf32, #tpu.memory_space<vmem>>, vector<8x384xf32>
    tpu.vector_store %arg5[%c0_88, %c0_89], %80 {strides = array<i32>} : memref<8x384xf32, #tpu.memory_space<vmem>>, vector<8x384xf32>,
    return
  }
  func.func @transform_0(%arg0: i32) -> (i32, i32) {
    %c0_i32 = arith.constant 0 : i32
    %c0_i32_0 = arith.constant 0 : i32
    %c0_i32_1 = arith.constant 0 : i32
    return %c0_i32, %c0_i32_0 : i32, i32
  }
  func.func @transform_1(%arg0: i32) -> (i32, i32) {
    %c0_i32 = arith.constant 0 : i32
    %c0_i32_0 = arith.constant 0 : i32
    %c0_i32_1 = arith.constant 0 : i32
    return %c0_i32, %c0_i32_0 : i32, i32
  }
  func.func @transform_2(%arg0: i32) -> (i32, i32) {
    %c0_i32 = arith.constant 0 : i32
    %c0_i32_0 = arith.constant 0 : i32
    %c0_i32_1 = arith.constant 0 : i32
    return %c0_i32, %c0_i32_0 : i32, i32
  }
  func.func @transform_3(%arg0: i32) -> (i32, i32) {
    %c0_i32 = arith.constant 0 : i32
    %c0_i32_0 = arith.constant 0 : i32
    %c0_i32_1 = arith.constant 0 : i32
    return %c0_i32, %c0_i32_0 : i32, i32
  }
  func.func @transform_4(%arg0: i32) -> (i32, i32) {
    %c0_i32 = arith.constant 0 : i32
    %c0_i32_0 = arith.constant 0 : i32
    %c0_i32_1 = arith.constant 0 : i32
    return %c0_i32, %c0_i32_0 : i32, i32
  }
}

</mosaic_0001>

<llo_original>
// kernel: reverse.0
$region0: #{reverse.0}
  %s0 = inlined_call_operand.vmem [shape: f32[2,4,16,7], index: 0, kind: input, shape index: {}]
  %s1 = inlined_call_operand.vmem [shape: f32[2,4,16,7], index: 1, kind: output, shape index: {}]
  $region1: #{reverse.0} parent=0
    #allocation0 [shape = 'u8[65536]{0}', space=vmem, size = 0x10000, scoped, tag = 'operand span for operand 0']
    #allocation1 [shape = 'u8[32768]{0}', space=vmem, size = 0x8000, scoped, tag = 'operand span for operand 1']
    %s2 = scalar_lea.vmem [#allocation0], 8
    // Predicated region
    $region2: #{reverse.0} parent=1 // pred_check
      _
    $region3: #{reverse.0} parent=1 // pred_check_branch
      %4 = sbr.rel (0) target = $region5
    $region4: #{reverse.0} parent=1 // pred_region
      // Predicated region
      $region6: #{reverse.0} parent=4 // pred_check
        _
      $region7: #{reverse.0} parent=4 // pred_check_branch
        %6 = sbr.rel (0) target = $region9
      $region8: #{reverse.0} parent=4 // pred_region
        // Predicated region
        $region21: #{reverse.0} parent=8 // pred_check
          _
        $region22: #{reverse.0} parent=8 // pred_check_branch
          %36 = sbr.rel (0) target = $region24
        $region23: #{reverse.0} parent=8 // pred_region
          loop: start=0, step=1, limit=1
          $region25: #{reverse.0} parent=23 // loop_pre_header
            _
          $region26: #{reverse.0} parent=23 // loop_header
            %s38 = sphi 0, %s42
            %p39 = scmp.ge.s32.totalorder %s38, 1
            %s43 = sphi %s0, %s0
            %s44 = sphi %s2, %s2
          $region27: #{reverse.0} parent=23 // loop_header_branch
            %41 = sbr.rel (%p39) target = $region31
          $region28: #{reverse.0} parent=23 // loop_body
            %v45 = vld [vmem:[%s43] sm:$0xff]
            %46 = vst [vmem:[%s44] sm:$0xff] %v45
            %v47 = vld [vmem:[%s43 + $0x8] sm:$0xff]
            %48 = vst [vmem:[%s44 + $0x10] sm:$0xff] %v47
            %v49 = vld [vmem:[%s43 + $0x10] sm:$0xff]
            %50 = vst [vmem:[%s44 + $0x20] sm:$0xff] %v49
            %v51 = vld [vmem:[%s43 + $0x18] sm:$0xff]
            %52 = vst [vmem:[%s44 + $0x30] sm:$0xff] %v51
            %v53 = vld [vmem:[%s43 + $0x20] sm:$0xff]
            %54 = vst [vmem:[%s44 + $0x40] sm:$0xff] %v53
            %v55 = vld [vmem:[%s43 + $0x28] sm:$0xff]
            %56 = vst [vmem:[%s44 + $0x50] sm:$0xff] %v55
            %v57 = vld [vmem:[%s43 + $0x30] sm:$0xff]
            %58 = vst [vmem:[%s44 + $0x60] sm:$0xff] %v57
            %v59 = vld [vmem:[%s43 + $0x38] sm:$0xff]
            %60 = vst [vmem:[%s44 + $0x70] sm:$0xff] %v59
          $region29: #{reverse.0} parent=23 // loop_footer
            %s42 = sadd.s32 1, %s38
          $region30: #{reverse.0} parent=23 // loop_footer_branch
            %37 = sbr.rel target = $region26
          $region31: #{reverse.0} parent=23 // loop_exit
            _
        $region24: #{reverse.0} parent=8 // pred_fallthru
          _
        // Predicated region
        $region32: #{reverse.0} parent=8 // pred_check
          _
        $region33: #{reverse.0} parent=8 // pred_check_branch
          %62 = sbr.rel target = $region35
        $region34: #{reverse.0} parent=8 // pred_region
          _
        $region35: #{reverse.0} parent=8 // pred_fallthru
          _
      $region9: #{reverse.0} parent=4 // pred_fallthru
        _
      // Predicated region
      $region10: #{reverse.0} parent=4 // pred_check
        _
      $region11: #{reverse.0} parent=4 // pred_check_branch
        %8 = sbr.rel target = $region13
      $region12: #{reverse.0} parent=4 // pred_region
        %s10 = ssub.s32 256, 1
        loop: start=0, step=1, limit=1
        $region14: #{reverse.0} parent=12 // loop_pre_header
          _
        $region15: #{reverse.0} parent=12 // loop_header
          %s12 = sphi 0, %s16
          %p13 = scmp.ge.s32.totalorder %s12, 1
          %s17 = sphi %s0, %s0
          %s18 = sphi %s2, %s2
        $region16: #{reverse.0} parent=12 // loop_header_branch
          %15 = sbr.rel (%p13) target = $region20
        $region17: #{reverse.0} parent=12 // loop_body
          %v19 = vld [vmem:[%s17] sm:%s10]
          %20 = vst [vmem:[%s18] sm:%s10] %v19
          %v21 = vld [vmem:[%s17 + $0x8] sm:%s10]
          %22 = vst [vmem:[%s18 + $0x10] sm:%s10] %v21
          %v23 = vld [vmem:[%s17 + $0x10] sm:%s10]
          %24 = vst [vmem:[%s18 + $0x20] sm:%s10] %v23
          %v25 = vld [vmem:[%s17 + $0x18] sm:%s10]
          %26 = vst [vmem:[%s18 + $0x30] sm:%s10] %v25
          %v27 = vld [vmem:[%s17 + $0x20] sm:%s10]
          %28 = vst [vmem:[%s18 + $0x40] sm:%s10] %v27
          %v29 = vld [vmem:[%s17 + $0x28] sm:%s10]
          %30 = vst [vmem:[%s18 + $0x50] sm:%s10] %v29
          %v31 = vld [vmem:[%s17 + $0x30] sm:%s10]
          %32 = vst [vmem:[%s18 + $0x60] sm:%s10] %v31
          %v33 = vld [vmem:[%s17 + $0x38] sm:%s10]
          %34 = vst [vmem:[%s18 + $0x70] sm:%s10] %v33
        $region18: #{reverse.0} parent=12 // loop_footer
          %s16 = sadd.s32 1, %s12
        $region19: #{reverse.0} parent=12 // loop_footer_branch
          %11 = sbr.rel target = $region15
        $region20: #{reverse.0} parent=12 // loop_exit
          _
      $region13: #{reverse.0} parent=4 // pred_fallthru
        _
    $region5: #{reverse.0} parent=1 // pred_fallthru
      _
    %63 = vnop
    %s64 = scalar_lea.vmem [#allocation0], 7
    %v65 = vld [vmem:[%s64] ss:$-1 sm:$0xff]
    %v66 = vrot.slane %v65, 1
    %67 = vst [vmem:[#allocation1] sm:$0xff] %v66
    %s68 = scalar_lea.vmem [#allocation0], 8
    %s69 = scalar_lea.vmem %s68, 7 [#allocation0]
    %v70 = vld [vmem:[%s69] ss:$-1 sm:$0xff]
    %v71 = vrot.slane %v70, 1
    %v72 = vlaneseq
    %v73 = vshrl.u32 %v72, 7
    %vm74 = vcmp.lt.s32.totalorder %v73, 7
    %75 = vst.msk [vmem:[#allocation1] sm:$0xff] %vm74, %v71
    %s76 = scalar_lea.vmem [#allocation1], 8
    %s77 = scalar_lea.vmem [#allocation0], 16
    %s78 = scalar_lea.vmem %s77, 7 [#allocation0]
    %v79 = vld [vmem:[%s78] ss:$-1 sm:$0xff]
    %v80 = vrot.slane %v79, 1
    %81 = vst [vmem:[%s76] sm:$0xff] %v80
    %s82 = scalar_lea.vmem %s77, 8 [#allocation0]
    %s83 = scalar_lea.vmem %s82, 7 [#allocation0]
    %v84 = vld [vmem:[%s83] ss:$-1 sm:$0xff]
    %v85 = vrot.slane %v84, 1
    %v86 = vlaneseq
    %v87 = vshrl.u32 %v86, 7
    %vm88 = vcmp.lt.s32.totalorder %v87, 7
    %89 = vst.msk [vmem:[%s76] sm:$0xff] %vm88, %v85
    %s90 = scalar_lea.vmem [#allocation1], 16
    %s91 = scalar_lea.vmem [#allocation0], 32
    %s92 = scalar_lea.vmem %s91, 7 [#allocation0]
    %v93 = vld [vmem:[%s92] ss:$-1 sm:$0xff]
    %v94 = vrot.slane %v93, 1
    %95 = vst [vmem:[%s90] sm:$0xff] %v94
    %s96 = scalar_lea.vmem %s91, 8 [#allocation0]
    %s97 = scalar_lea.vmem %s96, 7 [#allocation0]
    %v98 = vld [vmem:[%s97] ss:$-1 sm:$0xff]
    %v99 = vrot.slane %v98, 1
    %v100 = vlaneseq
    %v101 = vshrl.u32 %v100, 7
    %vm102 = vcmp.lt.s32.totalorder %v101, 7
    %103 = vst.msk [vmem:[%s90] sm:$0xff] %vm102, %v99
    %s104 = scalar_lea.vmem [#allocation1], 24
    %s105 = scalar_lea.vmem [#allocation0], 48
    %s106 = scalar_lea.vmem %s105, 7 [#allocation0]
    %v107 = vld [vmem:[%s106] ss:$-1 sm:$0xff]
    %v108 = vrot.slane %v107, 1
    %109 = vst [vmem:[%s104] sm:$0xff] %v108
    %s110 = scalar_lea.vmem %s105, 8 [#allocation0]
    %s111 = scalar_lea.vmem %s110, 7 [#allocation0]
    %v112 = vld [vmem:[%s111] ss:$-1 sm:$0xff]
    %v113 = vrot.slane %v112, 1
    %v114 = vlaneseq
    %v115 = vshrl.u32 %v114, 7
    %vm116 = vcmp.lt.s32.totalorder %v115, 7
    %117 = vst.msk [vmem:[%s104] sm:$0xff] %vm116, %v113
    %s118 = scalar_lea.vmem [#allocation1], 32
    %s119 = scalar_lea.vmem [#allocation0], 64
    %s120 = scalar_lea.vmem %s119, 7 [#allocation0]
    %v121 = vld [vmem:[%s120] ss:$-1 sm:$0xff]
    %v122 = vrot.slane %v121, 1
    %123 = vst [vmem:[%s118] sm:$0xff] %v122
    %s124 = scalar_lea.vmem %s119, 8 [#allocation0]
    %s125 = scalar_lea.vmem %s124, 7 [#allocation0]
    %v126 = vld [vmem:[%s125] ss:$-1 sm:$0xff]
    %v127 = vrot.slane %v126, 1
    %v128 = vlaneseq
    %v129 = vshrl.u32 %v128, 7
    %vm130 = vcmp.lt.s32.totalorder %v129, 7
    %131 = vst.msk [vmem:[%s118] sm:$0xff] %vm130, %v127
    %s132 = scalar_lea.vmem [#allocation1], 40
    %s133 = scalar_lea.vmem [#allocation0], 80
    %s134 = scalar_lea.vmem %s133, 7 [#allocation0]
    %v135 = vld [vmem:[%s134] ss:$-1 sm:$0xff]
    %v136 = vrot.slane %v135, 1
    %137 = vst [vmem:[%s132] sm:$0xff] %v136
    %s138 = scalar_lea.vmem %s133, 8 [#allocation0]
    %s139 = scalar_lea.vmem %s138, 7 [#allocation0]
    %v140 = vld [vmem:[%s139] ss:$-1 sm:$0xff]
    %v141 = vrot.slane %v140, 1
    %v142 = vlaneseq
    %v143 = vshrl.u32 %v142, 7
    %vm144 = vcmp.lt.s32.totalorder %v143, 7
    %145 = vst.msk [vmem:[%s132] sm:$0xff] %vm144, %v141
    %s146 = scalar_lea.vmem [#allocation1], 48
    %s147 = scalar_lea.vmem [#allocation0], 96
    %s148 = scalar_lea.vmem %s147, 7 [#allocation0]
    %v149 = vld [vmem:[%s148] ss:$-1 sm:$0xff]
    %v150 = vrot.slane %v149, 1
    %151 = vst [vmem:[%s146] sm:$0xff] %v150
    %s152 = scalar_lea.vmem %s147, 8 [#allocation0]
    %s153 = scalar_lea.vmem %s152, 7 [#allocation0]
    %v154 = vld [vmem:[%s153] ss:$-1 sm:$0xff]
    %v155 = vrot.slane %v154, 1
    %v156 = vlaneseq
    %v157 = vshrl.u32 %v156, 7
    %vm158 = vcmp.lt.s32.totalorder %v157, 7
    %159 = vst.msk [vmem:[%s146] sm:$0xff] %vm158, %v155
    %s160 = scalar_lea.vmem [#allocation1], 56
    %s161 = scalar_lea.vmem [#allocation0], 112
    %s162 = scalar_lea.vmem %s161, 7 [#allocation0]
    %v163 = vld [vmem:[%s162] ss:$-1 sm:$0xff]
    %v164 = vrot.slane %v163, 1
    %165 = vst [vmem:[%s160] sm:$0xff] %v164
    %s166 = scalar_lea.vmem %s161, 8 [#allocation0]
    %s167 = scalar_lea.vmem %s166, 7 [#allocation0]
    %v168 = vld [vmem:[%s167] ss:$-1 sm:$0xff]
    %v169 = vrot.slane %v168, 1
    %v170 = vlaneseq
    %v171 = vshrl.u32 %v170, 7
    %vm172 = vcmp.lt.s32.totalorder %v171, 7
    %173 = vst.msk [vmem:[%s160] sm:$0xff] %vm172, %v169
    // Predicated region
    $region36: #{reverse.0} parent=1 // pred_check
      _
    $region37: #{reverse.0} parent=1 // pred_check_branch
      %175 = sbr.rel (0) target = $region39
    $region38: #{reverse.0} parent=1 // pred_region
      // Predicated region
      $region40: #{reverse.0} parent=38 // pred_check
        _
      $region41: #{reverse.0} parent=38 // pred_check_branch
        %177 = sbr.rel (0) target = $region43
      $region42: #{reverse.0} parent=38 // pred_region
        // Predicated region
        $region55: #{reverse.0} parent=42 // pred_check
          _
        $region56: #{reverse.0} parent=42 // pred_check_branch
          %207 = sbr.rel (0) target = $region58
        $region57: #{reverse.0} parent=42 // pred_region
          loop: start=0, step=1, limit=1
          $region59: #{reverse.0} parent=57 // loop_pre_header
            _
          $region60: #{reverse.0} parent=57 // loop_header
            %s209 = sphi 0, %s213
            %p210 = scmp.ge.s32.totalorder %s209, 1
            %s214 = sphi [#allocation1], [#allocation1]
            %s215 = sphi %s1, %s1
          $region61: #{reverse.0} parent=57 // loop_header_branch
            %212 = sbr.rel (%p210) target = $region65
          $region62: #{reverse.0} parent=57 // loop_body
            %v216 = vld [vmem:[%s214] sm:$0xff]
            %217 = vst [vmem:[%s215] sm:$0xff] %v216
            %v218 = vld [vmem:[%s214 + $0x8] sm:$0xff]
            %219 = vst [vmem:[%s215 + $0x8] sm:$0xff] %v218
            %v220 = vld [vmem:[%s214 + $0x10] sm:$0xff]
            %221 = vst [vmem:[%s215 + $0x10] sm:$0xff] %v220
            %v222 = vld [vmem:[%s214 + $0x18] sm:$0xff]
            %223 = vst [vmem:[%s215 + $0x18] sm:$0xff] %v222
            %v224 = vld [vmem:[%s214 + $0x20] sm:$0xff]
            %225 = vst [vmem:[%s215 + $0x20] sm:$0xff] %v224
            %v226 = vld [vmem:[%s214 + $0x28] sm:$0xff]
            %227 = vst [vmem:[%s215 + $0x28] sm:$0xff] %v226
            %v228 = vld [vmem:[%s214 + $0x30] sm:$0xff]
            %229 = vst [vmem:[%s215 + $0x30] sm:$0xff] %v228
            %v230 = vld [vmem:[%s214 + $0x38] sm:$0xff]
            %231 = vst [vmem:[%s215 + $0x38] sm:$0xff] %v230
          $region63: #{reverse.0} parent=57 // loop_footer
            %s213 = sadd.s32 1, %s209
          $region64: #{reverse.0} parent=57 // loop_footer_branch
            %208 = sbr.rel target = $region60
          $region65: #{reverse.0} parent=57 // loop_exit
            _
        $region58: #{reverse.0} parent=42 // pred_fallthru
          _
        // Predicated region
        $region66: #{reverse.0} parent=42 // pred_check
          _
        $region67: #{reverse.0} parent=42 // pred_check_branch
          %233 = sbr.rel target = $region69
        $region68: #{reverse.0} parent=42 // pred_region
          _
        $region69: #{reverse.0} parent=42 // pred_fallthru
          _
      $region43: #{reverse.0} parent=38 // pred_fallthru
        _
      // Predicated region
      $region44: #{reverse.0} parent=38 // pred_check
        _
      $region45: #{reverse.0} parent=38 // pred_check_branch
        %179 = sbr.rel target = $region47
      $region46: #{reverse.0} parent=38 // pred_region
        %s181 = ssub.s32 256, 1
        loop: start=0, step=1, limit=1
        $region48: #{reverse.0} parent=46 // loop_pre_header
          _
        $region49: #{reverse.0} parent=46 // loop_header
          %s183 = sphi 0, %s187
          %p184 = scmp.ge.s32.totalorder %s183, 1
          %s188 = sphi [#allocation1], [#allocation1]
          %s189 = sphi %s1, %s1
        $region50: #{reverse.0} parent=46 // loop_header_branch
          %186 = sbr.rel (%p184) target = $region54
        $region51: #{reverse.0} parent=46 // loop_body
          %v190 = vld [vmem:[%s188] sm:%s181]
          %191 = vst [vmem:[%s189] sm:%s181] %v190
          %v192 = vld [vmem:[%s188 + $0x8] sm:%s181]
          %193 = vst [vmem:[%s189 + $0x8] sm:%s181] %v192
          %v194 = vld [vmem:[%s188 + $0x10] sm:%s181]
          %195 = vst [vmem:[%s189 + $0x10] sm:%s181] %v194
          %v196 = vld [vmem:[%s188 + $0x18] sm:%s181]
          %197 = vst [vmem:[%s189 + $0x18] sm:%s181] %v196
          %v198 = vld [vmem:[%s188 + $0x20] sm:%s181]
          %199 = vst [vmem:[%s189 + $0x20] sm:%s181] %v198
          %v200 = vld [vmem:[%s188 + $0x28] sm:%s181]
          %201 = vst [vmem:[%s189 + $0x28] sm:%s181] %v200
          %v202 = vld [vmem:[%s188 + $0x30] sm:%s181]
          %203 = vst [vmem:[%s189 + $0x30] sm:%s181] %v202
          %v204 = vld [vmem:[%s188 + $0x38] sm:%s181]
          %205 = vst [vmem:[%s189 + $0x38] sm:%s181] %v204
        $region52: #{reverse.0} parent=46 // loop_footer
          %s187 = sadd.s32 1, %s183
        $region53: #{reverse.0} parent=46 // loop_footer_branch
          %182 = sbr.rel target = $region49
        $region54: #{reverse.0} parent=46 // loop_exit
          _
      $region47: #{reverse.0} parent=38 // pred_fallthru
        _
    $region39: #{reverse.0} parent=1 // pred_fallthru
      _
    %234 = vnop

// kernel: resblock_do_fft_bench_forward.2
$region0: #{resblock_do_fft_bench_forward.2}
  #allocation0 [shape = 'u32[]', space=smem, size = 0x4, offset = 0x4, fixed_abs, tag = 'smem constant byte address 0x4 - core index']
  #allocation1 [shape = 'u32[144,128]{1,0:T(1,128)}', space=vmem, size = 0x12000, scoped, tag = 'internal scratch']
  %s0 = inlined_call_operand.vmem [shape: f32[8,256], index: 0, kind: input, shape index: {}]
  %s1 = inlined_call_operand.vmem [shape: f32[8,256], index: 1, kind: input, shape index: {}]
  %s2 = inlined_call_operand.vmem [shape: f32[8,8], index: 2, kind: input, shape index: {}]
  %s3 = inlined_call_operand.vmem [shape: f32[8,8], index: 3, kind: input, shape index: {}]
  %s4 = inlined_call_operand.vmem [shape: f32[8,256], index: 4, kind: output, shape index: {0}]
  %s5 = inlined_call_operand.vmem [shape: f32[8,256], index: 5, kind: output, shape index: {1}]
  %6 = xla_tuple %s4, %s5
  %s7 = sld [smem:[#allocation0]]
  $region34: #{resblock_do_fft_bench_forward.2} parent=0
    _
  %s9 = ssub.s32 1, %s7
  %s10 = scalar_select 0, %s9, %s7
  // Predicated region
  $region2: #{resblock_do_fft_bench_forward.2} parent=0 // pred_check
    _
  $region3: #{resblock_do_fft_bench_forward.2} parent=0 // pred_check_branch
    %12 = sbr.rel (0) target = $region5
  $region4: #{resblock_do_fft_bench_forward.2} parent=0 // pred_region
    _
  $region5: #{resblock_do_fft_bench_forward.2} parent=0 // pred_fallthru
    _
  // Predicated region
  $region6: #{resblock_do_fft_bench_forward.2} parent=0 // pred_check
    _
  $region7: #{resblock_do_fft_bench_forward.2} parent=0 // pred_check_branch
    %14 = sbr.rel (0) target = $region9
  $region8: #{resblock_do_fft_bench_forward.2} parent=0 // pred_region
    _
  $region9: #{resblock_do_fft_bench_forward.2} parent=0 // pred_fallthru
    _
  // Predicated region
  $region10: #{resblock_do_fft_bench_forward.2} parent=0 // pred_check
    _
  $region11: #{resblock_do_fft_bench_forward.2} parent=0 // pred_check_branch
    %16 = sbr.rel (0) target = $region13
  $region12: #{resblock_do_fft_bench_forward.2} parent=0 // pred_region
    _
  $region13: #{resblock_do_fft_bench_forward.2} parent=0 // pred_fallthru
    _
  // Predicated region
  $region14: #{resblock_do_fft_bench_forward.2} parent=0 // pred_check
    _
  $region15: #{resblock_do_fft_bench_forward.2} parent=0 // pred_check_branch
    %18 = sbr.rel (0) target = $region17
  $region16: #{resblock_do_fft_bench_forward.2} parent=0 // pred_region
    _
  $region17: #{resblock_do_fft_bench_forward.2} parent=0 // pred_fallthru
    _
  %v19 = vld [vmem:[%s2] sm:$0xff]
  %v20 = vld [vmem:[%s3] sm:$0xff]
  %v21 = vld [vmem:[%s0] sm:$0xff]
  %v22 = vld [vmem:[%s0 + $0x8] sm:$0xff]
  %v23 = vld [vmem:[%s1] sm:$0xff]
  %v24 = vld [vmem:[%s1 + $0x8] sm:$0xff]
  %v27 = vrot.slane %v23, 4
  %v28 = vrot.slane %v24, 4
  %vm31 = vcmask 1043456
  %v32 = vsel %vm31, %v21, %v27
  %v33 = vsel %vm31, %v22, %v28
  %vm34 = vcmask 64512
  %v36 = vsel %vm34, %v19, 0
  %38 = vmatprep.subr.mxu0 0.0
  %39 = vmatpush1.msra.mxu0 0.0
  %40 = vmatprep.subr.mxu0 0.0
  %41 = vmatpush1.msra.mxu0 0.0
  %42 = vmatprep.subr.mxu0 0.0
  %43 = vmatpush1.msra.mxu0 0.0
  %44 = vmatprep.subr.mxu0 0.0
  %45 = vmatpush1.msra.mxu0 0.0
  %46 = vmatprep.subr.mxu0 0.0
  %47 = vmatpush1.msra.mxu0 0.0
  %48 = vmatprep.subr.mxu0 0.0
  %49 = vmatpush1.msra.mxu0 0.0
  %50 = vmatprep.subr.mxu0 0.0
  %51 = vmatpush1.msra.mxu0 0.0
  %52 = vmatprep.subr.mxu0 0.0
  %53 = vmatpush1.msra.mxu0 0.0
  %54 = vmatprep.subr.mxu0 0.0
  %55 = vmatpush1.msra.mxu0 0.0
  %56 = vmatprep.subr.mxu0 0.0
  %57 = vmatpush1.msra.mxu0 0.0
  %58 = vmatprep.subr.mxu0 0.0
  %59 = vmatpush1.msra.mxu0 0.0
  %60 = vmatprep.subr.mxu0 0.0
  %61 = vmatpush1.msra.mxu0 0.0
  %62 = vmatprep.subr.mxu0 0.0
  %63 = vmatpush1.msra.mxu0 0.0
  %64 = vmatprep.subr.mxu0 0.0
  %65 = vmatpush1.msra.mxu0 0.0
  %66 = vmatprep.subr.mxu0 0.0
  %67 = vmatpush1.msra.mxu0 0.0
  %68 = vmatprep.subr.mxu0 %v33
  %69 = vmatpush1.msra.mxu0 %v32
  %70 = vmatprep.subr.mxu0 0.0
  %71 = vmatpush2.msra.mxu0 0.0
  %72 = vmatprep.subr.mxu0 0.0
  %73 = vmatpush2.msra.mxu0 0.0
  %74 = vmatprep.subr.mxu0 0.0
  %75 = vmatpush2.msra.mxu0 0.0
  %76 = vmatprep.subr.mxu0 0.0
  %77 = vmatpush2.msra.mxu0 0.0
  %78 = vmatprep.subr.mxu0 0.0
  %79 = vmatpush2.msra.mxu0 0.0
  %80 = vmatprep.subr.mxu0 0.0
  %81 = vmatpush2.msra.mxu0 0.0
  %82 = vmatprep.subr.mxu0 0.0
  %83 = vmatpush2.msra.mxu0 0.0
  %84 = vmatprep.subr.mxu0 0.0
  %85 = vmatpush2.msra.mxu0 0.0
  %86 = vmatprep.subr.mxu0 0.0
  %87 = vmatpush2.msra.mxu0 0.0
  %88 = vmatprep.subr.mxu0 0.0
  %89 = vmatpush2.msra.mxu0 0.0
  %90 = vmatprep.subr.mxu0 0.0
  %91 = vmatpush2.msra.mxu0 0.0
  %92 = vmatprep.subr.mxu0 0.0
  %93 = vmatpush2.msra.mxu0 0.0
  %94 = vmatprep.subr.mxu0 0.0
  %95 = vmatpush2.msra.mxu0 0.0
  %96 = vmatprep.subr.mxu0 0.0
  %97 = vmatpush2.msra.mxu0 0.0
  %98 = vmatprep.subr.mxu0 0.0
  %99 = vmatpush2.msra.mxu0 0.0
  %100 = vmatprep.subr.mxu0 0.0
  %101 = vmatpush2.msra.mxu0 0.0
  %102 = vmatprep.mubr.f32.mxu0 0.0
  %103 = vmatmul.mubr.f32.gmra.mxu0 %v36
  %v104 = vpop.f32.mrf.mxu0
  %v105 = vadd.f32 0.0, %v104
  %v106 = vpop.f32.mrf.mxu0
  %v107 = vadd.f32 0.0, %v106
  %108 = vdwg.mxu0
  %v109 = vmax.f32 %v105, 0.0
  %v110 = vmax.f32 %v107, 0.0
  %v112 = vsel %vm34, %v20, 0
  %114 = vmatprep.subr.mxu0 0.0
  %115 = vmatpush1.msra.mxu0 0.0
  %116 = vmatprep.subr.mxu0 0.0
  %117 = vmatpush1.msra.mxu0 0.0
  %118 = vmatprep.subr.mxu0 0.0
  %119 = vmatpush1.msra.mxu0 0.0
  %120 = vmatprep.subr.mxu0 0.0
  %121 = vmatpush1.msra.mxu0 0.0
  %122 = vmatprep.subr.mxu0 0.0
  %123 = vmatpush1.msra.mxu0 0.0
  %124 = vmatprep.subr.mxu0 0.0
  %125 = vmatpush1.msra.mxu0 0.0
  %126 = vmatprep.subr.mxu0 0.0
  %127 = vmatpush1.msra.mxu0 0.0
  %128 = vmatprep.subr.mxu0 0.0
  %129 = vmatpush1.msra.mxu0 0.0
  %130 = vmatprep.subr.mxu0 0.0
  %131 = vmatpush1.msra.mxu0 0.0
  %132 = vmatprep.subr.mxu0 0.0
  %133 = vmatpush1.msra.mxu0 0.0
  %134 = vmatprep.subr.mxu0 0.0
  %135 = vmatpush1.msra.mxu0 0.0
  %136 = vmatprep.subr.mxu0 0.0
  %137 = vmatpush1.msra.mxu0 0.0
  %138 = vmatprep.subr.mxu0 0.0
  %139 = vmatpush1.msra.mxu0 0.0
  %140 = vmatprep.subr.mxu0 0.0
  %141 = vmatpush1.msra.mxu0 0.0
  %142 = vmatprep.subr.mxu0 0.0
  %143 = vmatpush1.msra.mxu0 0.0
  %144 = vmatprep.subr.mxu0 %v110
  %145 = vmatpush1.msra.mxu0 %v109
  %146 = vmatprep.subr.mxu0 0.0
  %147 = vmatpush2.msra.mxu0 0.0
  %148 = vmatprep.subr.mxu0 0.0
  %149 = vmatpush2.msra.mxu0 0.0
  %150 = vmatprep.subr.mxu0 0.0
  %151 = vmatpush2.msra.mxu0 0.0
  %152 = vmatprep.subr.mxu0 0.0
  %153 = vmatpush2.msra.mxu0 0.0
  %154 = vmatprep.subr.mxu0 0.0
  %155 = vmatpush2.msra.mxu0 0.0
  %156 = vmatprep.subr.mxu0 0.0
  %157 = vmatpush2.msra.mxu0 0.0
  %158 = vmatprep.subr.mxu0 0.0
  %159 = vmatpush2.msra.mxu0 0.0
  %160 = vmatprep.subr.mxu0 0.0
  %161 = vmatpush2.msra.mxu0 0.0
  %162 = vmatprep.subr.mxu0 0.0
  %163 = vmatpush2.msra.mxu0 0.0
  %164 = vmatprep.subr.mxu0 0.0
  %165 = vmatpush2.msra.mxu0 0.0
  %166 = vmatprep.subr.mxu0 0.0
  %167 = vmatpush2.msra.mxu0 0.0
  %168 = vmatprep.subr.mxu0 0.0
  %169 = vmatpush2.msra.mxu0 0.0
  %170 = vmatprep.subr.mxu0 0.0
  %171 = vmatpush2.msra.mxu0 0.0
  %172 = vmatprep.subr.mxu0 0.0
  %173 = vmatpush2.msra.mxu0 0.0
  %174 = vmatprep.subr.mxu0 0.0
  %175 = vmatpush2.msra.mxu0 0.0
  %176 = vmatprep.subr.mxu0 0.0
  %177 = vmatpush2.msra.mxu0 0.0
  %178 = vmatprep.mubr.f32.mxu0 0.0
  %179 = vmatmul.mubr.f32.gmra.mxu0 %v112
  %v180 = vpop.f32.mrf.mxu0
  %v181 = vadd.f32 0.0, %v180
  %v182 = vpop.f32.mrf.mxu0
  %v183 = vadd.f32 0.0, %v182
  %184 = vdwg.mxu0
  %v187 = vrot.slane %v21, 4
  %v188 = vrot.slane %v22, 4
  %v191 = vsel %vm31, %v187, %v23
  %v192 = vsel %vm31, %v188, %v24
  %193 = vmatprep.subr.mxu0 0.0
  %194 = vmatpush1.msra.mxu0 0.0
  %195 = vmatprep.subr.mxu0 0.0
  %196 = vmatpush1.msra.mxu0 0.0
  %197 = vmatprep.subr.mxu0 0.0
  %198 = vmatpush1.msra.mxu0 0.0
  %199 = vmatprep.subr.mxu0 0.0
  %200 = vmatpush1.msra.mxu0 0.0
  %201 = vmatprep.subr.mxu0 0.0
  %202 = vmatpush1.msra.mxu0 0.0
  %203 = vmatprep.subr.mxu0 0.0
  %204 = vmatpush1.msra.mxu0 0.0
  %205 = vmatprep.subr.mxu0 0.0
  %206 = vmatpush1.msra.mxu0 0.0
  %207 = vmatprep.subr.mxu0 0.0
  %208 = vmatpush1.msra.mxu0 0.0
  %209 = vmatprep.subr.mxu0 0.0
  %210 = vmatpush1.msra.mxu0 0.0
  %211 = vmatprep.subr.mxu0 0.0
  %212 = vmatpush1.msra.mxu0 0.0
  %213 = vmatprep.subr.mxu0 0.0
  %214 = vmatpush1.msra.mxu0 0.0
  %215 = vmatprep.subr.mxu0 0.0
  %216 = vmatpush1.msra.mxu0 0.0
  %217 = vmatprep.subr.mxu0 0.0
  %218 = vmatpush1.msra.mxu0 0.0
  %219 = vmatprep.subr.mxu0 0.0
  %220 = vmatpush1.msra.mxu0 0.0
  %221 = vmatprep.subr.mxu0 0.0
  %222 = vmatpush1.msra.mxu0 0.0
  %223 = vmatprep.subr.mxu0 %v192
  %224 = vmatpush1.msra.mxu0 %v191
  %225 = vmatprep.subr.mxu0 0.0
  %226 = vmatpush2.msra.mxu0 0.0
  %227 = vmatprep.subr.mxu0 0.0
  %228 = vmatpush2.msra.mxu0 0.0
  %229 = vmatprep.subr.mxu0 0.0
  %230 = vmatpush2.msra.mxu0 0.0
  %231 = vmatprep.subr.mxu0 0.0
  %232 = vmatpush2.msra.mxu0 0.0
  %233 = vmatprep.subr.mxu0 0.0
  %234 = vmatpush2.msra.mxu0 0.0
  %235 = vmatprep.subr.mxu0 0.0
  %236 = vmatpush2.msra.mxu0 0.0
  %237 = vmatprep.subr.mxu0 0.0
  %238 = vmatpush2.msra.mxu0 0.0
  %239 = vmatprep.subr.mxu0 0.0
  %240 = vmatpush2.msra.mxu0 0.0
  %241 = vmatprep.subr.mxu0 0.0
  %242 = vmatpush2.msra.mxu0 0.0
  %243 = vmatprep.subr.mxu0 0.0
  %244 = vmatpush2.msra.mxu0 0.0
  %245 = vmatprep.subr.mxu0 0.0
  %246 = vmatpush2.msra.mxu0 0.0
  %247 = vmatprep.subr.mxu0 0.0
  %248 = vmatpush2.msra.mxu0 0.0
  %249 = vmatprep.subr.mxu0 0.0
  %250 = vmatpush2.msra.mxu0 0.0
  %251 = vmatprep.subr.mxu0 0.0
  %252 = vmatpush2.msra.mxu0 0.0
  %253 = vmatprep.subr.mxu0 0.0
  %254 = vmatpush2.msra.mxu0 0.0
  %255 = vmatprep.subr.mxu0 0.0
  %256 = vmatpush2.msra.mxu0 0.0
  %257 = vmatprep.mubr.f32.mxu0 0.0
  %258 = vmatmul.mubr.f32.gmra.mxu0 %v36
  %v259 = vpop.f32.mrf.mxu0
  %v260 = vadd.f32 0.0, %v259
  %v261 = vpop.f32.mrf.mxu0
  %v262 = vadd.f32 0.0, %v261
  %263 = vdwg.mxu0
  %v264 = vmax.f32 %v260, 0.0
  %v265 = vmax.f32 %v262, 0.0
  %266 = vmatprep.subr.mxu0 0.0
  %267 = vmatpush1.msra.mxu0 0.0
  %268 = vmatprep.subr.mxu0 0.0
  %269 = vmatpush1.msra.mxu0 0.0
  %270 = vmatprep.subr.mxu0 0.0
  %271 = vmatpush1.msra.mxu0 0.0
  %272 = vmatprep.subr.mxu0 0.0
  %273 = vmatpush1.msra.mxu0 0.0
  %274 = vmatprep.subr.mxu0 0.0
  %275 = vmatpush1.msra.mxu0 0.0
  %276 = vmatprep.subr.mxu0 0.0
  %277 = vmatpush1.msra.mxu0 0.0
  %278 = vmatprep.subr.mxu0 0.0
  %279 = vmatpush1.msra.mxu0 0.0
  %280 = vmatprep.subr.mxu0 0.0
  %281 = vmatpush1.msra.mxu0 0.0
  %282 = vmatprep.subr.mxu0 0.0
  %283 = vmatpush1.msra.mxu0 0.0
  %284 = vmatprep.subr.mxu0 0.0
  %285 = vmatpush1.msra.mxu0 0.0
  %286 = vmatprep.subr.mxu0 0.0
  %287 = vmatpush1.msra.mxu0 0.0
  %288 = vmatprep.subr.mxu0 0.0
  %289 = vmatpush1.msra.mxu0 0.0
  %290 = vmatprep.subr.mxu0 0.0
  %291 = vmatpush1.msra.mxu0 0.0
  %292 = vmatprep.subr.mxu0 0.0
  %293 = vmatpush1.msra.mxu0 0.0
  %294 = vmatprep.subr.mxu0 0.0
  %295 = vmatpush1.msra.mxu0 0.0
  %296 = vmatprep.subr.mxu0 %v265
  %297 = vmatpush1.msra.mxu0 %v264
  %298 = vmatprep.subr.mxu0 0.0
  %299 = vmatpush2.msra.mxu0 0.0
  %300 = vmatprep.subr.mxu0 0.0
  %301 = vmatpush2.msra.mxu0 0.0
  %302 = vmatprep.subr.mxu0 0.0
  %303 = vmatpush2.msra.mxu0 0.0
  %304 = vmatprep.subr.mxu0 0.0
  %305 = vmatpush2.msra.mxu0 0.0
  %306 = vmatprep.subr.mxu0 0.0
  %307 = vmatpush2.msra.mxu0 0.0
  %308 = vmatprep.subr.mxu0 0.0
  %309 = vmatpush2.msra.mxu0 0.0
  %310 = vmatprep.subr.mxu0 0.0
  %311 = vmatpush2.msra.mxu0 0.0
  %312 = vmatprep.subr.mxu0 0.0
  %313 = vmatpush2.msra.mxu0 0.0
  %314 = vmatprep.subr.mxu0 0.0
  %315 = vmatpush2.msra.mxu0 0.0
  %316 = vmatprep.subr.mxu0 0.0
  %317 = vmatpush2.msra.mxu0 0.0
  %318 = vmatprep.subr.mxu0 0.0
  %319 = vmatpush2.msra.mxu0 0.0
  %320 = vmatprep.subr.mxu0 0.0
  %321 = vmatpush2.msra.mxu0 0.0
  %322 = vmatprep.subr.mxu0 0.0
  %323 = vmatpush2.msra.mxu0 0.0
  %324 = vmatprep.subr.mxu0 0.0
  %325 = vmatpush2.msra.mxu0 0.0
  %326 = vmatprep.subr.mxu0 0.0
  %327 = vmatpush2.msra.mxu0 0.0
  %328 = vmatprep.subr.mxu0 0.0
  %329 = vmatpush2.msra.mxu0 0.0
  %330 = vmatprep.mubr.f32.mxu0 0.0
  %331 = vmatmul.mubr.f32.gmra.mxu0 %v112
  %v332 = vpop.f32.mrf.mxu0
  %v333 = vadd.f32 0.0, %v332
  %v334 = vpop.f32.mrf.mxu0
  %v335 = vadd.f32 0.0, %v334
  %336 = vdwg.mxu0
  %v339 = vrot.slane %v333, 4
  %v340 = vrot.slane %v335, 4
  %v343 = vsel %vm31, %v181, %v339
  %v344 = vsel %vm31, %v183, %v340
  %345 = vst [vmem:[%s4] sm:$0xff] %v343
  %346 = vst [vmem:[%s4 + $0x8] sm:$0xff] %v344
  %v349 = vrot.slane %v181, 4
  %v350 = vrot.slane %v183, 4
  %v353 = vsel %vm31, %v349, %v333
  %v354 = vsel %vm31, %v350, %v335
  %355 = vst [vmem:[%s5] sm:$0xff] %v353
  %356 = vst [vmem:[%s5 + $0x8] sm:$0xff] %v354
  // Predicated region
  $region18: #{resblock_do_fft_bench_forward.2} parent=0 // pred_check
    _
  $region19: #{resblock_do_fft_bench_forward.2} parent=0 // pred_check_branch
    %358 = sbr.rel (0) target = $region21
  $region20: #{resblock_do_fft_bench_forward.2} parent=0 // pred_region
    _
  $region21: #{resblock_do_fft_bench_forward.2} parent=0 // pred_fallthru
    _
  // Predicated region
  $region22: #{resblock_do_fft_bench_forward.2} parent=0 // pred_check
    _
  $region23: #{resblock_do_fft_bench_forward.2} parent=0 // pred_check_branch
    %360 = sbr.rel (0) target = $region25
  $region24: #{resblock_do_fft_bench_forward.2} parent=0 // pred_region
    _
  $region25: #{resblock_do_fft_bench_forward.2} parent=0 // pred_fallthru
    _
  // Predicated region
  $region26: #{resblock_do_fft_bench_forward.2} parent=0 // pred_check
    _
  $region27: #{resblock_do_fft_bench_forward.2} parent=0 // pred_check_branch
    %362 = sbr.rel (0) target = $region29
  $region28: #{resblock_do_fft_bench_forward.2} parent=0 // pred_region
    _
  $region29: #{resblock_do_fft_bench_forward.2} parent=0 // pred_fallthru
    _
  // Predicated region
  $region30: #{resblock_do_fft_bench_forward.2} parent=0 // pred_check
    _
  $region31: #{resblock_do_fft_bench_forward.2} parent=0 // pred_check_branch
    %364 = sbr.rel (0) target = $region33
  $region32: #{resblock_do_fft_bench_forward.2} parent=0 // pred_region
    _
  $region33: #{resblock_do_fft_bench_forward.2} parent=0 // pred_fallthru
    _

// kernel: resblock_do_fft_bench_forward.3
$region0: #{resblock_do_fft_bench_forward.3}
  #allocation0 [shape = 'u32[]', space=smem, size = 0x4, offset = 0x4, fixed_abs, tag = 'smem constant byte address 0x4 - core index']
  #allocation1 [shape = 'u32[144,128]{1,0:T(1,128)}', space=vmem, size = 0x12000, scoped, tag = 'internal scratch']
  #allocation2 [shape = 'f32[8,640]{1,0:T(8,128)}', space=vmem, size = 0x5000, scoped, tag = 'scratch operand']
  %s0 = inlined_call_operand.vmem [shape: f32[8,640], index: 0, kind: input, shape index: {}]
  %s1 = inlined_call_operand.vmem [shape: f32[8,384], index: 1, kind: input, shape index: {}]
  %s2 = inlined_call_operand.vmem [shape: f32[4,36], index: 2, kind: input, shape index: {}]
  %s3 = inlined_call_operand.vmem [shape: f32[4,36], index: 3, kind: input, shape index: {}]
  %s4 = inlined_call_operand.vmem [shape: f32[8,384], index: 4, kind: output, shape index: {}]
  %s5 = sld [smem:[#allocation0]]
  $region26: #{resblock_do_fft_bench_forward.3} parent=0
    _
  %s7 = ssub.s32 1, %s5
  %s8 = scalar_select 0, %s7, %s5
  // Predicated region
  $region2: #{resblock_do_fft_bench_forward.3} parent=0 // pred_check
    _
  $region3: #{resblock_do_fft_bench_forward.3} parent=0 // pred_check_branch
    %10 = sbr.rel (0) target = $region5
  $region4: #{resblock_do_fft_bench_forward.3} parent=0 // pred_region
    _
  $region5: #{resblock_do_fft_bench_forward.3} parent=0 // pred_fallthru
    _
  // Predicated region
  $region6: #{resblock_do_fft_bench_forward.3} parent=0 // pred_check
    _
  $region7: #{resblock_do_fft_bench_forward.3} parent=0 // pred_check_branch
    %12 = sbr.rel (0) target = $region9
  $region8: #{resblock_do_fft_bench_forward.3} parent=0 // pred_region
    _
  $region9: #{resblock_do_fft_bench_forward.3} parent=0 // pred_fallthru
    _
  // Predicated region
  $region10: #{resblock_do_fft_bench_forward.3} parent=0 // pred_check
    _
  $region11: #{resblock_do_fft_bench_forward.3} parent=0 // pred_check_branch
    %14 = sbr.rel (0) target = $region13
  $region12: #{resblock_do_fft_bench_forward.3} parent=0 // pred_region
    _
  $region13: #{resblock_do_fft_bench_forward.3} parent=0 // pred_fallthru
    _
  // Predicated region
  $region14: #{resblock_do_fft_bench_forward.3} parent=0 // pred_check
    _
  $region15: #{resblock_do_fft_bench_forward.3} parent=0 // pred_check_branch
    %16 = sbr.rel (0) target = $region17
  $region16: #{resblock_do_fft_bench_forward.3} parent=0 // pred_region
    _
  $region17: #{resblock_do_fft_bench_forward.3} parent=0 // pred_fallthru
    _
  %v17 = vlaneseq
  %v18 = vand.u32 %v17, 127
  %v19 = vadd.s32 %v18, 128
  %v20 = vadd.s32 %v18, 256
  %v21 = vcvt.s32.f32 %v18
  %v22 = vcvt.s32.f32 %v19
  %v23 = vcvt.s32.f32 %v20
  %v24 = vadd.f32 %v21, 0.5
  %v25 = vadd.f32 %v22, 0.5
  %v26 = vadd.f32 %v23, 0.5
  %v27 = vmul.f32 %v24, 0.055555556
  %v28 = vmul.f32 %v25, 0.055555556
  %v29 = vmul.f32 %v26, 0.055555556
  %v30 = vfloor.f32 %v27
  %v31 = vfloor.f32 %v28
  %v32 = vfloor.f32 %v29
  %v33 = vmul.f32 %v30, 18.0
  %v34 = vmul.f32 %v31, 18.0
  %v35 = vmul.f32 %v32, 18.0
  %v36 = vsub.f32 %v21, %v33
  %v37 = vsub.f32 %v22, %v34
  %v38 = vsub.f32 %v23, %v35
  %vm39 = vcmp.lt.f32.partialorder %v36, 16.0
  %vm40 = vcmp.lt.f32.partialorder %v37, 16.0
  %vm41 = vcmp.lt.f32.partialorder %v38, 16.0
  %vm42 = vcmp.lt.f32.partialorder %v21, 288.0
  %vm43 = vcmp.lt.f32.partialorder %v22, 288.0
  %vm44 = vcmp.lt.f32.partialorder %v23, 288.0
  %vm45 = vmand %vm39, %vm42
  %vm46 = vmand %vm40, %vm43
  %vm47 = vmand %vm41, %vm44
  %v48 = vsel %vm45, 1.0, 0.0
  %v49 = vsel %vm46, 1.0, 0.0
  %v50 = vsel %vm47, 1.0, 0.0
  %v51 = vld [vmem:[%s2] sm:$0xf]
  %v52 = vld [vmem:[%s3] sm:$0xf]
  %v53 = vld [vmem:[%s0] sm:$0xf]
  %v54 = vld [vmem:[%s0 + $0x8] sm:$0xf]
  %v55 = vld [vmem:[%s0 + $0x10] sm:$0xf]
  %v56 = vld [vmem:[%s0 + $0x18] sm:$0xf]
  %v57 = vld [vmem:[%s0 + $0x8] sm:$0xf]
  %v58 = vld [vmem:[%s0 + $0x10] sm:$0xf]
  %v59 = vld [vmem:[%s0 + $0x18] sm:$0xf]
  %v60 = vld [vmem:[%s0 + $0x20] sm:$0xf]
  %v65 = vrot.slane %v53, 4
  %v66 = vrot.slane %v54, 4
  %v67 = vrot.slane %v55, 4
  %v68 = vrot.slane %v56, 4
  %69 = vrot.lane.b32.xlu0 %v65, 127
  %v70 = vpop.permute.xlu0 %69
  %71 = vrot.lane.b32.xlu0 %v66, 127
  %v72 = vpop.permute.xlu0 %71
  %73 = vrot.lane.b32.xlu0 %v67, 127
  %v74 = vpop.permute.xlu0 %73
  %75 = vrot.lane.b32.xlu0 %v68, 127
  %v76 = vpop.permute.xlu0 %75
  %vm77 = vcmask 1039360
  %v78 = vsel %vm77, %v70, %v72
  %v79 = vsel %vm77, %v72, %v74
  %v80 = vsel %vm77, %v74, %v76
  %85 = vrot.lane.b32.xlu0 %v53, 126
  %v86 = vpop.permute.xlu0 %85
  %87 = vrot.lane.b32.xlu0 %v54, 126
  %v88 = vpop.permute.xlu0 %87
  %89 = vrot.lane.b32.xlu0 %v55, 126
  %v90 = vpop.permute.xlu0 %89
  %91 = vrot.lane.b32.xlu0 %v56, 126
  %v92 = vpop.permute.xlu0 %91
  %vm93 = vcmask 1031168
  %v94 = vsel %vm93, %v86, %v88
  %v95 = vsel %vm93, %v88, %v90
  %v96 = vsel %vm93, %v90, %v92
  %101 = vrot.lane.b32.xlu0 %v65, 110
  %v102 = vpop.permute.xlu0 %101
  %103 = vrot.lane.b32.xlu0 %v66, 110
  %v104 = vpop.permute.xlu0 %103
  %105 = vrot.lane.b32.xlu0 %v67, 110
  %v106 = vpop.permute.xlu0 %105
  %107 = vrot.lane.b32.xlu0 %v68, 110
  %v108 = vpop.permute.xlu0 %107
  %vm109 = vcmask 900096
  %v110 = vsel %vm109, %v102, %v104
  %v111 = vsel %vm109, %v104, %v106
  %v112 = vsel %vm109, %v106, %v108
  %117 = vrot.lane.b32.xlu0 %v54, 109
  %v118 = vpop.permute.xlu0 %117
  %119 = vrot.lane.b32.xlu0 %v55, 109
  %v120 = vpop.permute.xlu0 %119
  %121 = vrot.lane.b32.xlu0 %v56, 109
  %v122 = vpop.permute.xlu0 %121
  %vm123 = vcmask 891904
  %v124 = vsel %vm123, %v118, %v120
  %v125 = vsel %vm123, %v120, %v122
  %v134 = vrot.slane %v57, 4
  %v135 = vrot.slane %v58, 4
  %v136 = vrot.slane %v59, 4
  %v137 = vrot.slane %v60, 4
  %138 = vrot.lane.b32.xlu0 %v134, 108
  %v139 = vpop.permute.xlu0 %138
  %140 = vrot.lane.b32.xlu0 %v135, 108
  %v141 = vpop.permute.xlu0 %140
  %142 = vrot.lane.b32.xlu0 %v136, 108
  %v143 = vpop.permute.xlu0 %142
  %144 = vrot.lane.b32.xlu0 %v137, 108
  %v145 = vpop.permute.xlu0 %144
  %vm146 = vcmask 883712
  %v147 = vsel %vm146, %v139, %v141
  %v148 = vsel %vm146, %v141, %v143
  %v149 = vsel %vm146, %v143, %v145
  %154 = vrot.lane.b32.xlu0 %v57, 92
  %v155 = vpop.permute.xlu0 %154
  %156 = vrot.lane.b32.xlu0 %v58, 92
  %v157 = vpop.permute.xlu0 %156
  %158 = vrot.lane.b32.xlu0 %v59, 92
  %v159 = vpop.permute.xlu0 %158
  %160 = vrot.lane.b32.xlu0 %v60, 92
  %v161 = vpop.permute.xlu0 %160
  %vm162 = vcmask 752640
  %v163 = vsel %vm162, %v155, %v157
  %v164 = vsel %vm162, %v157, %v159
  %v165 = vsel %vm162, %v159, %v161
  %170 = vrot.lane.b32.xlu0 %v134, 91
  %v171 = vpop.permute.xlu0 %170
  %172 = vrot.lane.b32.xlu0 %v135, 91
  %v173 = vpop.permute.xlu0 %172
  %174 = vrot.lane.b32.xlu0 %v136, 91
  %v175 = vpop.permute.xlu0 %174
  %176 = vrot.lane.b32.xlu0 %v137, 91
  %v177 = vpop.permute.xlu0 %176
  %vm178 = vcmask 744448
  %v179 = vsel %vm178, %v171, %v173
  %v180 = vsel %vm178, %v173, %v175
  %v181 = vsel %vm178, %v175, %v177
  %186 = vrot.lane.b32.xlu0 %v57, 90
  %v187 = vpop.permute.xlu0 %186
  %188 = vrot.lane.b32.xlu0 %v58, 90
  %v189 = vpop.permute.xlu0 %188
  %190 = vrot.lane.b32.xlu0 %v59, 90
  %v191 = vpop.permute.xlu0 %190
  %192 = vrot.lane.b32.xlu0 %v60, 90
  %v193 = vpop.permute.xlu0 %192
  %vm194 = vcmask 736256
  %v195 = vsel %vm194, %v187, %v189
  %v196 = vsel %vm194, %v189, %v191
  %v197 = vsel %vm194, %v191, %v193
  %vm198 = vcmask 1043456
  %v199 = vsel %vm198, %v53, %v78
  %v200 = vsel %vm198, %v54, %v79
  %v201 = vsel %vm198, %v55, %v80
  %v202 = vsel %vm198, %v56, %v76
  %v203 = vsel %vm198, %v94, %v110
  %v204 = vsel %vm198, %v95, %v111
  %v205 = vsel %vm198, %v96, %v112
  %v206 = vsel %vm198, %v92, %v108
  %v207 = vsel %vm198, %v118, %v139
  %v208 = vsel %vm198, %v124, %v147
  %v209 = vsel %vm198, %v125, %v148
  %v210 = vsel %vm198, %v122, %v149
  %v211 = vsel %vm198, %v155, %v171
  %v212 = vsel %vm198, %v163, %v179
  %v213 = vsel %vm198, %v164, %v180
  %v214 = vsel %vm198, %v165, %v181
  %231 = vrot.lane.b32.xlu0 %v199, 19
  %v232 = vpop.permute.xlu0 %231
  %233 = vrot.lane.b32.xlu0 %v200, 19
  %v234 = vpop.permute.xlu0 %233
  %235 = vrot.lane.b32.xlu0 %v201, 19
  %v236 = vpop.permute.xlu0 %235
  %237 = vrot.lane.b32.xlu0 %v202, 19
  %v238 = vpop.permute.xlu0 %237
  %239 = vrot.lane.b32.xlu0 %v203, 19
  %v240 = vpop.permute.xlu0 %239
  %241 = vrot.lane.b32.xlu0 %v204, 19
  %v242 = vpop.permute.xlu0 %241
  %243 = vrot.lane.b32.xlu0 %v205, 19
  %v244 = vpop.permute.xlu0 %243
  %245 = vrot.lane.b32.xlu0 %v206, 19
  %v246 = vpop.permute.xlu0 %245
  %247 = vrot.lane.b32.xlu0 %v207, 19
  %v248 = vpop.permute.xlu0 %247
  %249 = vrot.lane.b32.xlu0 %v208, 19
  %v250 = vpop.permute.xlu0 %249
  %251 = vrot.lane.b32.xlu0 %v209, 19
  %v252 = vpop.permute.xlu0 %251
  %253 = vrot.lane.b32.xlu0 %v210, 19
  %v254 = vpop.permute.xlu0 %253
  %255 = vrot.lane.b32.xlu0 %v211, 19
  %v256 = vpop.permute.xlu0 %255
  %257 = vrot.lane.b32.xlu0 %v212, 19
  %v258 = vpop.permute.xlu0 %257
  %259 = vrot.lane.b32.xlu0 %v213, 19
  %v260 = vpop.permute.xlu0 %259
  %261 = vrot.lane.b32.xlu0 %v214, 19
  %v262 = vpop.permute.xlu0 %261
  %263 = vrot.lane.b32.xlu0 %v187, 19
  %v264 = vpop.permute.xlu0 %263
  %265 = vrot.lane.b32.xlu0 %v195, 19
  %v266 = vpop.permute.xlu0 %265
  %267 = vrot.lane.b32.xlu0 %v196, 19
  %v268 = vpop.permute.xlu0 %267
  %269 = vrot.lane.b32.xlu0 %v197, 19
  %v270 = vpop.permute.xlu0 %269
  %vm271 = vcmask 154624
  %v272 = vsel %vm271, %v232, %v234
  %v273 = vsel %vm271, %v234, %v236
  %v274 = vsel %vm271, %v236, %v238
  %v275 = vsel %vm271, %v240, %v242
  %v276 = vsel %vm271, %v242, %v244
  %v277 = vsel %vm271, %v244, %v246
  %v278 = vsel %vm271, %v248, %v250
  %v279 = vsel %vm271, %v250, %v252
  %v280 = vsel %vm271, %v252, %v254
  %v281 = vsel %vm271, %v256, %v258
  %v282 = vsel %vm271, %v258, %v260
  %v283 = vsel %vm271, %v260, %v262
  %v284 = vsel %vm271, %v264, %v266
  %v285 = vsel %vm271, %v266, %v268
  %v286 = vsel %vm271, %v268, %v270
  %vm299 = vcmask 293888
  %v301 = vsel %vm299, %v51, 0
  %v303 = vsel %vm198, %v284, 0
  %v305 = vsel %vm198, %v285, 0
  %v307 = vsel %vm198, %v286, 0
  %309 = vmatprep.subr.mxu0 0.0
  %310 = vmatpush1.msra.mxu0 0.0
  %311 = vmatprep.subr.mxu0 0.0
  %312 = vmatpush1.msra.mxu0 0.0
  %313 = vmatprep.subr.mxu0 0.0
  %314 = vmatpush1.msra.mxu0 0.0
  %315 = vmatprep.subr.mxu0 0.0
  %316 = vmatpush1.msra.mxu0 0.0
  %317 = vmatprep.subr.mxu0 0.0
  %318 = vmatpush1.msra.mxu0 0.0
  %319 = vmatprep.subr.mxu0 0.0
  %320 = vmatpush1.msra.mxu0 0.0
  %321 = vmatprep.subr.mxu0 0.0
  %322 = vmatpush1.msra.mxu0 0.0
  %323 = vmatprep.subr.mxu0 0.0
  %324 = vmatpush1.msra.mxu0 0.0
  %325 = vmatprep.subr.mxu0 0.0
  %326 = vmatpush1.msra.mxu0 0.0
  %327 = vmatprep.subr.mxu0 0.0
  %328 = vmatpush1.msra.mxu0 0.0
  %329 = vmatprep.subr.mxu0 0.0
  %330 = vmatpush1.msra.mxu0 0.0
  %331 = vmatprep.subr.mxu0 %v305
  %332 = vmatpush1.msra.mxu0 %v303
  %333 = vmatprep.subr.mxu0 %v282
  %334 = vmatpush1.msra.mxu0 %v281
  %335 = vmatprep.subr.mxu0 %v279
  %336 = vmatpush1.msra.mxu0 %v278
  %337 = vmatprep.subr.mxu0 %v276
  %338 = vmatpush1.msra.mxu0 %v275
  %339 = vmatprep.subr.mxu0 %v273
  %340 = vmatpush1.msra.mxu0 %v272
  %341 = vmatprep.subr.mxu0 0.0
  %342 = vmatpush2.msra.mxu0 0.0
  %343 = vmatprep.subr.mxu0 0.0
  %344 = vmatpush2.msra.mxu0 0.0
  %345 = vmatprep.subr.mxu0 0.0
  %346 = vmatpush2.msra.mxu0 0.0
  %347 = vmatprep.subr.mxu0 0.0
  %348 = vmatpush2.msra.mxu0 0.0
  %349 = vmatprep.subr.mxu0 0.0
  %350 = vmatpush2.msra.mxu0 0.0
  %351 = vmatprep.subr.mxu0 0.0
  %352 = vmatpush2.msra.mxu0 0.0
  %353 = vmatprep.subr.mxu0 0.0
  %354 = vmatpush2.msra.mxu0 0.0
  %355 = vmatprep.subr.mxu0 0.0
  %356 = vmatpush2.msra.mxu0 0.0
  %357 = vmatprep.subr.mxu0 0.0
  %358 = vmatpush2.msra.mxu0 0.0
  %359 = vmatprep.subr.mxu0 0.0
  %360 = vmatpush2.msra.mxu0 0.0
  %361 = vmatprep.subr.mxu0 0.0
  %362 = vmatpush2.msra.mxu0 0.0
  %363 = vmatprep.subr.mxu0 0.0
  %364 = vmatpush2.msra.mxu0 0.0
  %365 = vmatprep.subr.mxu0 0.0
  %366 = vmatpush2.msra.mxu0 0.0
  %367 = vmatprep.subr.mxu0 0.0
  %368 = vmatpush2.msra.mxu0 0.0
  %369 = vmatprep.subr.mxu0 0.0
  %370 = vmatpush2.msra.mxu0 0.0
  %371 = vmatprep.subr.mxu0 0.0
  %372 = vmatpush2.msra.mxu0 0.0
  %373 = vmatprep.mubr.f32.mxu0 0.0
  %374 = vmatmul.mubr.f32.gmra.mxu0 %v301
  %v375 = vpop.f32.mrf.mxu0
  %v376 = vadd.f32 0.0, %v375
  %v377 = vpop.f32.mrf.mxu0
  %v378 = vadd.f32 0.0, %v377
  %379 = vdwg.mxu0
  %380 = vmatprep.subr.mxu0 0.0
  %381 = vmatpush1.msra.mxu0 0.0
  %382 = vmatprep.subr.mxu0 0.0
  %383 = vmatpush1.msra.mxu0 0.0
  %384 = vmatprep.subr.mxu0 0.0
  %385 = vmatpush1.msra.mxu0 0.0
  %386 = vmatprep.subr.mxu0 0.0
  %387 = vmatpush1.msra.mxu0 0.0
  %388 = vmatprep.subr.mxu0 0.0
  %389 = vmatpush1.msra.mxu0 0.0
  %390 = vmatprep.subr.mxu0 0.0
  %391 = vmatpush1.msra.mxu0 0.0
  %392 = vmatprep.subr.mxu0 0.0
  %393 = vmatpush1.msra.mxu0 0.0
  %394 = vmatprep.subr.mxu0 0.0
  %395 = vmatpush1.msra.mxu0 0.0
  %396 = vmatprep.subr.mxu0 0.0
  %397 = vmatpush1.msra.mxu0 0.0
  %398 = vmatprep.subr.mxu0 0.0
  %399 = vmatpush1.msra.mxu0 0.0
  %400 = vmatprep.subr.mxu0 0.0
  %401 = vmatpush1.msra.mxu0 0.0
  %402 = vmatprep.subr.mxu0 0.0
  %403 = vmatpush1.msra.mxu0 %v307
  %404 = vmatprep.subr.mxu0 0.0
  %405 = vmatpush1.msra.mxu0 %v283
  %406 = vmatprep.subr.mxu0 0.0
  %407 = vmatpush1.msra.mxu0 %v280
  %408 = vmatprep.subr.mxu0 0.0
  %409 = vmatpush1.msra.mxu0 %v277
  %410 = vmatprep.subr.mxu0 0.0
  %411 = vmatpush1.msra.mxu0 %v274
  %412 = vmatprep.subr.mxu0 0.0
  %413 = vmatpush2.msra.mxu0 0.0
  %414 = vmatprep.subr.mxu0 0.0
  %415 = vmatpush2.msra.mxu0 0.0
  %416 = vmatprep.subr.mxu0 0.0
  %417 = vmatpush2.msra.mxu0 0.0
  %418 = vmatprep.subr.mxu0 0.0
  %419 = vmatpush2.msra.mxu0 0.0
  %420 = vmatprep.subr.mxu0 0.0
  %421 = vmatpush2.msra.mxu0 0.0
  %422 = vmatprep.subr.mxu0 0.0
  %423 = vmatpush2.msra.mxu0 0.0
  %424 = vmatprep.subr.mxu0 0.0
  %425 = vmatpush2.msra.mxu0 0.0
  %426 = vmatprep.subr.mxu0 0.0
  %427 = vmatpush2.msra.mxu0 0.0
  %428 = vmatprep.subr.mxu0 0.0
  %429 = vmatpush2.msra.mxu0 0.0
  %430 = vmatprep.subr.mxu0 0.0
  %431 = vmatpush2.msra.mxu0 0.0
  %432 = vmatprep.subr.mxu0 0.0
  %433 = vmatpush2.msra.mxu0 0.0
  %434 = vmatprep.subr.mxu0 0.0
  %435 = vmatpush2.msra.mxu0 0.0
  %436 = vmatprep.subr.mxu0 0.0
  %437 = vmatpush2.msra.mxu0 0.0
  %438 = vmatprep.subr.mxu0 0.0
  %439 = vmatpush2.msra.mxu0 0.0
  %440 = vmatprep.subr.mxu0 0.0
  %441 = vmatpush2.msra.mxu0 0.0
  %442 = vmatprep.subr.mxu0 0.0
  %443 = vmatpush2.msra.mxu0 0.0
  %444 = vmatprep.mubr.f32.mxu0 0.0
  %445 = vmatmul.mubr.f32.gmra.mxu0 %v301
  %v446 = vpop.f32.mrf.mxu0
  %v447 = vadd.f32 0.0, %v446
  %v448 = vpop.f32.mrf.mxu0
  %449 = vdwg.mxu0
  %v450 = vmax.f32 %v376, 0.0
  %v451 = vmax.f32 %v378, 0.0
  %v452 = vmax.f32 %v447, 0.0
  %v453 = vld [vmem:[%s0] sm:$0xf0]
  %v454 = vld [vmem:[%s0 + $0x8] sm:$0xf0]
  %v455 = vld [vmem:[%s0 + $0x10] sm:$0xf0]
  %v456 = vld [vmem:[%s0 + $0x18] sm:$0xf0]
  %v457 = vld [vmem:[%s0 + $0x8] sm:$0xf0]
  %v458 = vld [vmem:[%s0 + $0x10] sm:$0xf0]
  %v459 = vld [vmem:[%s0 + $0x18] sm:$0xf0]
  %v460 = vld [vmem:[%s0 + $0x20] sm:$0xf0]
  %v465 = vrot.slane %v453, 4
  %v466 = vrot.slane %v454, 4
  %v467 = vrot.slane %v455, 4
  %v468 = vrot.slane %v456, 4
  %473 = vrot.lane.b32.xlu0 %v453, 127
  %v474 = vpop.permute.xlu0 %473
  %475 = vrot.lane.b32.xlu0 %v454, 127
  %v476 = vpop.permute.xlu0 %475
  %477 = vrot.lane.b32.xlu0 %v455, 127
  %v478 = vpop.permute.xlu0 %477
  %479 = vrot.lane.b32.xlu0 %v456, 127
  %v480 = vpop.permute.xlu0 %479
  %v481 = vsel %vm77, %v474, %v476
  %v482 = vsel %vm77, %v476, %v478
  %v483 = vsel %vm77, %v478, %v480
  %488 = vrot.lane.b32.xlu0 %v465, 126
  %v489 = vpop.permute.xlu0 %488
  %490 = vrot.lane.b32.xlu0 %v466, 126
  %v491 = vpop.permute.xlu0 %490
  %492 = vrot.lane.b32.xlu0 %v467, 126
  %v493 = vpop.permute.xlu0 %492
  %494 = vrot.lane.b32.xlu0 %v468, 126
  %v495 = vpop.permute.xlu0 %494
  %v496 = vsel %vm93, %v489, %v491
  %v497 = vsel %vm93, %v491, %v493
  %v498 = vsel %vm93, %v493, %v495
  %503 = vrot.lane.b32.xlu0 %v453, 110
  %v504 = vpop.permute.xlu0 %503
  %505 = vrot.lane.b32.xlu0 %v454, 110
  %v506 = vpop.permute.xlu0 %505
  %507 = vrot.lane.b32.xlu0 %v455, 110
  %v508 = vpop.permute.xlu0 %507
  %509 = vrot.lane.b32.xlu0 %v456, 110
  %v510 = vpop.permute.xlu0 %509
  %v511 = vsel %vm109, %v504, %v506
  %v512 = vsel %vm109, %v506, %v508
  %v513 = vsel %vm109, %v508, %v510
  %518 = vrot.lane.b32.xlu0 %v466, 109
  %v519 = vpop.permute.xlu0 %518
  %520 = vrot.lane.b32.xlu0 %v467, 109
  %v521 = vpop.permute.xlu0 %520
  %522 = vrot.lane.b32.xlu0 %v468, 109
  %v523 = vpop.permute.xlu0 %522
  %v524 = vsel %vm123, %v519, %v521
  %v525 = vsel %vm123, %v521, %v523
  %534 = vrot.lane.b32.xlu0 %v457, 108
  %v535 = vpop.permute.xlu0 %534
  %536 = vrot.lane.b32.xlu0 %v458, 108
  %v537 = vpop.permute.xlu0 %536
  %538 = vrot.lane.b32.xlu0 %v459, 108
  %v539 = vpop.permute.xlu0 %538
  %540 = vrot.lane.b32.xlu0 %v460, 108
  %v541 = vpop.permute.xlu0 %540
  %v542 = vsel %vm146, %v535, %v537
  %v543 = vsel %vm146, %v537, %v539
  %v544 = vsel %vm146, %v539, %v541
  %v549 = vrot.slane %v457, 4
  %v550 = vrot.slane %v458, 4
  %v551 = vrot.slane %v459, 4
  %v552 = vrot.slane %v460, 4
  %553 = vrot.lane.b32.xlu0 %v549, 92
  %v554 = vpop.permute.xlu0 %553
  %555 = vrot.lane.b32.xlu0 %v550, 92
  %v556 = vpop.permute.xlu0 %555
  %557 = vrot.lane.b32.xlu0 %v551, 92
  %v558 = vpop.permute.xlu0 %557
  %559 = vrot.lane.b32.xlu0 %v552, 92
  %v560 = vpop.permute.xlu0 %559
  %v561 = vsel %vm162, %v554, %v556
  %v562 = vsel %vm162, %v556, %v558
  %v563 = vsel %vm162, %v558, %v560
  %568 = vrot.lane.b32.xlu0 %v457, 91
  %v569 = vpop.permute.xlu0 %568
  %570 = vrot.lane.b32.xlu0 %v458, 91
  %v571 = vpop.permute.xlu0 %570
  %572 = vrot.lane.b32.xlu0 %v459, 91
  %v573 = vpop.permute.xlu0 %572
  %574 = vrot.lane.b32.xlu0 %v460, 91
  %v575 = vpop.permute.xlu0 %574
  %v576 = vsel %vm178, %v569, %v571
  %v577 = vsel %vm178, %v571, %v573
  %v578 = vsel %vm178, %v573, %v575
  %583 = vrot.lane.b32.xlu0 %v549, 90
  %v584 = vpop.permute.xlu0 %583
  %585 = vrot.lane.b32.xlu0 %v550, 90
  %v586 = vpop.permute.xlu0 %585
  %587 = vrot.lane.b32.xlu0 %v551, 90
  %v588 = vpop.permute.xlu0 %587
  %589 = vrot.lane.b32.xlu0 %v552, 90
  %v590 = vpop.permute.xlu0 %589
  %v591 = vsel %vm194, %v584, %v586
  %v592 = vsel %vm194, %v586, %v588
  %v593 = vsel %vm194, %v588, %v590
  %v594 = vsel %vm198, %v465, %v481
  %v595 = vsel %vm198, %v466, %v482
  %v596 = vsel %vm198, %v467, %v483
  %v597 = vsel %vm198, %v468, %v480
  %v598 = vsel %vm198, %v496, %v511
  %v599 = vsel %vm198, %v497, %v512
  %v600 = vsel %vm198, %v498, %v513
  %v601 = vsel %vm198, %v495, %v510
  %v602 = vsel %vm198, %v519, %v535
  %v603 = vsel %vm198, %v524, %v542
  %v604 = vsel %vm198, %v525, %v543
  %v605 = vsel %vm198, %v523, %v544
  %v606 = vsel %vm198, %v554, %v569
  %v607 = vsel %vm198, %v561, %v576
  %v608 = vsel %vm198, %v562, %v577
  %v609 = vsel %vm198, %v563, %v578
  %626 = vrot.lane.b32.xlu0 %v594, 19
  %v627 = vpop.permute.xlu0 %626
  %628 = vrot.lane.b32.xlu0 %v595, 19
  %v629 = vpop.permute.xlu0 %628
  %630 = vrot.lane.b32.xlu0 %v596, 19
  %v631 = vpop.permute.xlu0 %630
  %632 = vrot.lane.b32.xlu0 %v597, 19
  %v633 = vpop.permute.xlu0 %632
  %634 = vrot.lane.b32.xlu0 %v598, 19
  %v635 = vpop.permute.xlu0 %634
  %636 = vrot.lane.b32.xlu0 %v599, 19
  %v637 = vpop.permute.xlu0 %636
  %638 = vrot.lane.b32.xlu0 %v600, 19
  %v639 = vpop.permute.xlu0 %638
  %640 = vrot.lane.b32.xlu0 %v601, 19
  %v641 = vpop.permute.xlu0 %640
  %642 = vrot.lane.b32.xlu0 %v602, 19
  %v643 = vpop.permute.xlu0 %642
  %644 = vrot.lane.b32.xlu0 %v603, 19
  %v645 = vpop.permute.xlu0 %644
  %646 = vrot.lane.b32.xlu0 %v604, 19
  %v647 = vpop.permute.xlu0 %646
  %648 = vrot.lane.b32.xlu0 %v605, 19
  %v649 = vpop.permute.xlu0 %648
  %650 = vrot.lane.b32.xlu0 %v606, 19
  %v651 = vpop.permute.xlu0 %650
  %652 = vrot.lane.b32.xlu0 %v607, 19
  %v653 = vpop.permute.xlu0 %652
  %654 = vrot.lane.b32.xlu0 %v608, 19
  %v655 = vpop.permute.xlu0 %654
  %656 = vrot.lane.b32.xlu0 %v609, 19
  %v657 = vpop.permute.xlu0 %656
  %658 = vrot.lane.b32.xlu0 %v584, 19
  %v659 = vpop.permute.xlu0 %658
  %660 = vrot.lane.b32.xlu0 %v591, 19
  %v661 = vpop.permute.xlu0 %660
  %662 = vrot.lane.b32.xlu0 %v592, 19
  %v663 = vpop.permute.xlu0 %662
  %664 = vrot.lane.b32.xlu0 %v593, 19
  %v665 = vpop.permute.xlu0 %664
  %v666 = vsel %vm271, %v627, %v629
  %v667 = vsel %vm271, %v629, %v631
  %v668 = vsel %vm271, %v631, %v633
  %v669 = vsel %vm271, %v635, %v637
  %v670 = vsel %vm271, %v637, %v639
  %v671 = vsel %vm271, %v639, %v641
  %v672 = vsel %vm271, %v643, %v645
  %v673 = vsel %vm271, %v645, %v647
  %v674 = vsel %vm271, %v647, %v649
  %v675 = vsel %vm271, %v651, %v653
  %v676 = vsel %vm271, %v653, %v655
  %v677 = vsel %vm271, %v655, %v657
  %v678 = vsel %vm271, %v659, %v661
  %v679 = vsel %vm271, %v661, %v663
  %v680 = vsel %vm271, %v663, %v665
  %v693 = vsel %vm198, %v678, 0
  %v695 = vsel %vm198, %v679, 0
  %v697 = vsel %vm198, %v680, 0
  %699 = vmatprep.subr.mxu0 0.0
  %700 = vmatpush1.msra.mxu0 0.0
  %701 = vmatprep.subr.mxu0 0.0
  %702 = vmatpush1.msra.mxu0 0.0
  %703 = vmatprep.subr.mxu0 0.0
  %704 = vmatpush1.msra.mxu0 0.0
  %705 = vmatprep.subr.mxu0 0.0
  %706 = vmatpush1.msra.mxu0 0.0
  %707 = vmatprep.subr.mxu0 0.0
  %708 = vmatpush1.msra.mxu0 0.0
  %709 = vmatprep.subr.mxu0 0.0
  %710 = vmatpush1.msra.mxu0 0.0
  %711 = vmatprep.subr.mxu0 0.0
  %712 = vmatpush1.msra.mxu0 0.0
  %713 = vmatprep.subr.mxu0 0.0
  %714 = vmatpush1.msra.mxu0 0.0
  %715 = vmatprep.subr.mxu0 0.0
  %716 = vmatpush1.msra.mxu0 0.0
  %717 = vmatprep.subr.mxu0 0.0
  %718 = vmatpush1.msra.mxu0 0.0
  %719 = vmatprep.subr.mxu0 0.0
  %720 = vmatpush1.msra.mxu0 0.0
  %721 = vmatprep.subr.mxu0 %v695
  %722 = vmatpush1.msra.mxu0 %v693
  %723 = vmatprep.subr.mxu0 %v676
  %724 = vmatpush1.msra.mxu0 %v675
  %725 = vmatprep.subr.mxu0 %v673
  %726 = vmatpush1.msra.mxu0 %v672
  %727 = vmatprep.subr.mxu0 %v670
  %728 = vmatpush1.msra.mxu0 %v669
  %729 = vmatprep.subr.mxu0 %v667
  %730 = vmatpush1.msra.mxu0 %v666
  %731 = vmatprep.subr.mxu0 0.0
  %732 = vmatpush2.msra.mxu0 0.0
  %733 = vmatprep.subr.mxu0 0.0
  %734 = vmatpush2.msra.mxu0 0.0
  %735 = vmatprep.subr.mxu0 0.0
  %736 = vmatpush2.msra.mxu0 0.0
  %737 = vmatprep.subr.mxu0 0.0
  %738 = vmatpush2.msra.mxu0 0.0
  %739 = vmatprep.subr.mxu0 0.0
  %740 = vmatpush2.msra.mxu0 0.0
  %741 = vmatprep.subr.mxu0 0.0
  %742 = vmatpush2.msra.mxu0 0.0
  %743 = vmatprep.subr.mxu0 0.0
  %744 = vmatpush2.msra.mxu0 0.0
  %745 = vmatprep.subr.mxu0 0.0
  %746 = vmatpush2.msra.mxu0 0.0
  %747 = vmatprep.subr.mxu0 0.0
  %748 = vmatpush2.msra.mxu0 0.0
  %749 = vmatprep.subr.mxu0 0.0
  %750 = vmatpush2.msra.mxu0 0.0
  %751 = vmatprep.subr.mxu0 0.0
  %752 = vmatpush2.msra.mxu0 0.0
  %753 = vmatprep.subr.mxu0 0.0
  %754 = vmatpush2.msra.mxu0 0.0
  %755 = vmatprep.subr.mxu0 0.0
  %756 = vmatpush2.msra.mxu0 0.0
  %757 = vmatprep.subr.mxu0 0.0
  %758 = vmatpush2.msra.mxu0 0.0
  %759 = vmatprep.subr.mxu0 0.0
  %760 = vmatpush2.msra.mxu0 0.0
  %761 = vmatprep.subr.mxu0 0.0
  %762 = vmatpush2.msra.mxu0 0.0
  %763 = vmatprep.mubr.f32.mxu0 0.0
  %764 = vmatmul.mubr.f32.gmra.mxu0 %v301
  %v765 = vpop.f32.mrf.mxu0
  %v766 = vadd.f32 0.0, %v765
  %v767 = vpop.f32.mrf.mxu0
  %v768 = vadd.f32 0.0, %v767
  %769 = vdwg.mxu0
  %770 = vmatprep.subr.mxu0 0.0
  %771 = vmatpush1.msra.mxu0 0.0
  %772 = vmatprep.subr.mxu0 0.0
  %773 = vmatpush1.msra.mxu0 0.0
  %774 = vmatprep.subr.mxu0 0.0
  %775 = vmatpush1.msra.mxu0 0.0
  %776 = vmatprep.subr.mxu0 0.0
  %777 = vmatpush1.msra.mxu0 0.0
  %778 = vmatprep.subr.mxu0 0.0
  %779 = vmatpush1.msra.mxu0 0.0
  %780 = vmatprep.subr.mxu0 0.0
  %781 = vmatpush1.msra.mxu0 0.0
  %782 = vmatprep.subr.mxu0 0.0
  %783 = vmatpush1.msra.mxu0 0.0
  %784 = vmatprep.subr.mxu0 0.0
  %785 = vmatpush1.msra.mxu0 0.0
  %786 = vmatprep.subr.mxu0 0.0
  %787 = vmatpush1.msra.mxu0 0.0
  %788 = vmatprep.subr.mxu0 0.0
  %789 = vmatpush1.msra.mxu0 0.0
  %790 = vmatprep.subr.mxu0 0.0
  %791 = vmatpush1.msra.mxu0 0.0
  %792 = vmatprep.subr.mxu0 0.0
  %793 = vmatpush1.msra.mxu0 %v697
  %794 = vmatprep.subr.mxu0 0.0
  %795 = vmatpush1.msra.mxu0 %v677
  %796 = vmatprep.subr.mxu0 0.0
  %797 = vmatpush1.msra.mxu0 %v674
  %798 = vmatprep.subr.mxu0 0.0
  %799 = vmatpush1.msra.mxu0 %v671
  %800 = vmatprep.subr.mxu0 0.0
  %801 = vmatpush1.msra.mxu0 %v668
  %802 = vmatprep.subr.mxu0 0.0
  %803 = vmatpush2.msra.mxu0 0.0
  %804 = vmatprep.subr.mxu0 0.0
  %805 = vmatpush2.msra.mxu0 0.0
  %806 = vmatprep.subr.mxu0 0.0
  %807 = vmatpush2.msra.mxu0 0.0
  %808 = vmatprep.subr.mxu0 0.0
  %809 = vmatpush2.msra.mxu0 0.0
  %810 = vmatprep.subr.mxu0 0.0
  %811 = vmatpush2.msra.mxu0 0.0
  %812 = vmatprep.subr.mxu0 0.0
  %813 = vmatpush2.msra.mxu0 0.0
  %814 = vmatprep.subr.mxu0 0.0
  %815 = vmatpush2.msra.mxu0 0.0
  %816 = vmatprep.subr.mxu0 0.0
  %817 = vmatpush2.msra.mxu0 0.0
  %818 = vmatprep.subr.mxu0 0.0
  %819 = vmatpush2.msra.mxu0 0.0
  %820 = vmatprep.subr.mxu0 0.0
  %821 = vmatpush2.msra.mxu0 0.0
  %822 = vmatprep.subr.mxu0 0.0
  %823 = vmatpush2.msra.mxu0 0.0
  %824 = vmatprep.subr.mxu0 0.0
  %825 = vmatpush2.msra.mxu0 0.0
  %826 = vmatprep.subr.mxu0 0.0
  %827 = vmatpush2.msra.mxu0 0.0
  %828 = vmatprep.subr.mxu0 0.0
  %829 = vmatpush2.msra.mxu0 0.0
  %830 = vmatprep.subr.mxu0 0.0
  %831 = vmatpush2.msra.mxu0 0.0
  %832 = vmatprep.subr.mxu0 0.0
  %833 = vmatpush2.msra.mxu0 0.0
  %834 = vmatprep.mubr.f32.mxu0 0.0
  %835 = vmatmul.mubr.f32.gmra.mxu0 %v301
  %v836 = vpop.f32.mrf.mxu0
  %v837 = vadd.f32 0.0, %v836
  %v838 = vpop.f32.mrf.mxu0
  %839 = vdwg.mxu0
  %v840 = vmax.f32 %v766, 0.0
  %v841 = vmax.f32 %v768, 0.0
  %v842 = vmax.f32 %v837, 0.0
  %v846 = vrot.slane %v840, 4
  %v847 = vrot.slane %v841, 4
  %v848 = vrot.slane %v842, 4
  %v852 = vsel %vm198, %v450, %v846
  %v853 = vsel %vm198, %v451, %v847
  %v854 = vsel %vm198, %v452, %v848
  %v855 = vmul.f32 %v852, %v48
  %v856 = vmul.f32 %v853, %v49
  %v857 = vmul.f32 %v854, %v50
  %858 = vst [vmem:[#allocation2] sm:$0xff] 0.0
  %859 = vst [vmem:[#allocation2 + $0x20] sm:$0xff] 0.0
  %860 = vst [vmem:[#allocation2 + $0x8] sm:$0xff] %v855
  %861 = vst [vmem:[#allocation2 + $0x10] sm:$0xff] %v856
  %862 = vst [vmem:[#allocation2 + $0x18] sm:$0xff] %v857
  %v863 = vld [vmem:[#allocation2] sm:$0xf]
  %v864 = vld [vmem:[#allocation2 + $0x8] sm:$0xf]
  %v865 = vld [vmem:[#allocation2 + $0x10] sm:$0xf]
  %v866 = vld [vmem:[#allocation2 + $0x18] sm:$0xf]
  %v867 = vld [vmem:[#allocation2 + $0x8] sm:$0xf]
  %v868 = vld [vmem:[#allocation2 + $0x10] sm:$0xf]
  %v869 = vld [vmem:[#allocation2 + $0x18] sm:$0xf]
  %v870 = vld [vmem:[#allocation2 + $0x20] sm:$0xf]
  %v875 = vrot.slane %v863, 4
  %v876 = vrot.slane %v864, 4
  %v877 = vrot.slane %v865, 4
  %v878 = vrot.slane %v866, 4
  %879 = vrot.lane.b32.xlu0 %v875, 127
  %v880 = vpop.permute.xlu0 %879
  %881 = vrot.lane.b32.xlu0 %v876, 127
  %v882 = vpop.permute.xlu0 %881
  %883 = vrot.lane.b32.xlu0 %v877, 127
  %v884 = vpop.permute.xlu0 %883
  %885 = vrot.lane.b32.xlu0 %v878, 127
  %v886 = vpop.permute.xlu0 %885
  %v887 = vsel %vm77, %v880, %v882
  %v888 = vsel %vm77, %v882, %v884
  %v889 = vsel %vm77, %v884, %v886
  %894 = vrot.lane.b32.xlu0 %v863, 126
  %v895 = vpop.permute.xlu0 %894
  %896 = vrot.lane.b32.xlu0 %v864, 126
  %v897 = vpop.permute.xlu0 %896
  %898 = vrot.lane.b32.xlu0 %v865, 126
  %v899 = vpop.permute.xlu0 %898
  %900 = vrot.lane.b32.xlu0 %v866, 126
  %v901 = vpop.permute.xlu0 %900
  %v902 = vsel %vm93, %v895, %v897
  %v903 = vsel %vm93, %v897, %v899
  %v904 = vsel %vm93, %v899, %v901
  %909 = vrot.lane.b32.xlu0 %v875, 110
  %v910 = vpop.permute.xlu0 %909
  %911 = vrot.lane.b32.xlu0 %v876, 110
  %v912 = vpop.permute.xlu0 %911
  %913 = vrot.lane.b32.xlu0 %v877, 110
  %v914 = vpop.permute.xlu0 %913
  %915 = vrot.lane.b32.xlu0 %v878, 110
  %v916 = vpop.permute.xlu0 %915
  %v917 = vsel %vm109, %v910, %v912
  %v918 = vsel %vm109, %v912, %v914
  %v919 = vsel %vm109, %v914, %v916
  %924 = vrot.lane.b32.xlu0 %v864, 109
  %v925 = vpop.permute.xlu0 %924
  %926 = vrot.lane.b32.xlu0 %v865, 109
  %v927 = vpop.permute.xlu0 %926
  %928 = vrot.lane.b32.xlu0 %v866, 109
  %v929 = vpop.permute.xlu0 %928
  %v930 = vsel %vm123, %v925, %v927
  %v931 = vsel %vm123, %v927, %v929
  %v940 = vrot.slane %v867, 4
  %v941 = vrot.slane %v868, 4
  %v942 = vrot.slane %v869, 4
  %v943 = vrot.slane %v870, 4
  %944 = vrot.lane.b32.xlu0 %v940, 108
  %v945 = vpop.permute.xlu0 %944
  %946 = vrot.lane.b32.xlu0 %v941, 108
  %v947 = vpop.permute.xlu0 %946
  %948 = vrot.lane.b32.xlu0 %v942, 108
  %v949 = vpop.permute.xlu0 %948
  %950 = vrot.lane.b32.xlu0 %v943, 108
  %v951 = vpop.permute.xlu0 %950
  %v952 = vsel %vm146, %v945, %v947
  %v953 = vsel %vm146, %v947, %v949
  %v954 = vsel %vm146, %v949, %v951
  %959 = vrot.lane.b32.xlu0 %v867, 92
  %v960 = vpop.permute.xlu0 %959
  %961 = vrot.lane.b32.xlu0 %v868, 92
  %v962 = vpop.permute.xlu0 %961
  %963 = vrot.lane.b32.xlu0 %v869, 92
  %v964 = vpop.permute.xlu0 %963
  %965 = vrot.lane.b32.xlu0 %v870, 92
  %v966 = vpop.permute.xlu0 %965
  %v967 = vsel %vm162, %v960, %v962
  %v968 = vsel %vm162, %v962, %v964
  %v969 = vsel %vm162, %v964, %v966
  %974 = vrot.lane.b32.xlu0 %v940, 91
  %v975 = vpop.permute.xlu0 %974
  %976 = vrot.lane.b32.xlu0 %v941, 91
  %v977 = vpop.permute.xlu0 %976
  %978 = vrot.lane.b32.xlu0 %v942, 91
  %v979 = vpop.permute.xlu0 %978
  %980 = vrot.lane.b32.xlu0 %v943, 91
  %v981 = vpop.permute.xlu0 %980
  %v982 = vsel %vm178, %v975, %v977
  %v983 = vsel %vm178, %v977, %v979
  %v984 = vsel %vm178, %v979, %v981
  %989 = vrot.lane.b32.xlu0 %v867, 90
  %v990 = vpop.permute.xlu0 %989
  %991 = vrot.lane.b32.xlu0 %v868, 90
  %v992 = vpop.permute.xlu0 %991
  %993 = vrot.lane.b32.xlu0 %v869, 90
  %v994 = vpop.permute.xlu0 %993
  %995 = vrot.lane.b32.xlu0 %v870, 90
  %v996 = vpop.permute.xlu0 %995
  %v997 = vsel %vm194, %v990, %v992
  %v998 = vsel %vm194, %v992, %v994
  %v999 = vsel %vm194, %v994, %v996
  %v1000 = vsel %vm198, %v863, %v887
  %v1001 = vsel %vm198, %v864, %v888
  %v1002 = vsel %vm198, %v865, %v889
  %v1003 = vsel %vm198, %v866, %v886
  %v1004 = vsel %vm198, %v902, %v917
  %v1005 = vsel %vm198, %v903, %v918
  %v1006 = vsel %vm198, %v904, %v919
  %v1007 = vsel %vm198, %v901, %v916
  %v1008 = vsel %vm198, %v925, %v945
  %v1009 = vsel %vm198, %v930, %v952
  %v1010 = vsel %vm198, %v931, %v953
  %v1011 = vsel %vm198, %v929, %v954
  %v1012 = vsel %vm198, %v960, %v975
  %v1013 = vsel %vm198, %v967, %v982
  %v1014 = vsel %vm198, %v968, %v983
  %v1015 = vsel %vm198, %v969, %v984
  %1032 = vrot.lane.b32.xlu0 %v1000, 19
  %v1033 = vpop.permute.xlu0 %1032
  %1034 = vrot.lane.b32.xlu0 %v1001, 19
  %v1035 = vpop.permute.xlu0 %1034
  %1036 = vrot.lane.b32.xlu0 %v1002, 19
  %v1037 = vpop.permute.xlu0 %1036
  %1038 = vrot.lane.b32.xlu0 %v1003, 19
  %v1039 = vpop.permute.xlu0 %1038
  %1040 = vrot.lane.b32.xlu0 %v1004, 19
  %v1041 = vpop.permute.xlu0 %1040
  %1042 = vrot.lane.b32.xlu0 %v1005, 19
  %v1043 = vpop.permute.xlu0 %1042
  %1044 = vrot.lane.b32.xlu0 %v1006, 19
  %v1045 = vpop.permute.xlu0 %1044
  %1046 = vrot.lane.b32.xlu0 %v1007, 19
  %v1047 = vpop.permute.xlu0 %1046
  %1048 = vrot.lane.b32.xlu0 %v1008, 19
  %v1049 = vpop.permute.xlu0 %1048
  %1050 = vrot.lane.b32.xlu0 %v1009, 19
  %v1051 = vpop.permute.xlu0 %1050
  %1052 = vrot.lane.b32.xlu0 %v1010, 19
  %v1053 = vpop.permute.xlu0 %1052
  %1054 = vrot.lane.b32.xlu0 %v1011, 19
  %v1055 = vpop.permute.xlu0 %1054
  %1056 = vrot.lane.b32.xlu0 %v1012, 19
  %v1057 = vpop.permute.xlu0 %1056
  %1058 = vrot.lane.b32.xlu0 %v1013, 19
  %v1059 = vpop.permute.xlu0 %1058
  %1060 = vrot.lane.b32.xlu0 %v1014, 19
  %v1061 = vpop.permute.xlu0 %1060
  %1062 = vrot.lane.b32.xlu0 %v1015, 19
  %v1063 = vpop.permute.xlu0 %1062
  %1064 = vrot.lane.b32.xlu0 %v990, 19
  %v1065 = vpop.permute.xlu0 %1064
  %1066 = vrot.lane.b32.xlu0 %v997, 19
  %v1067 = vpop.permute.xlu0 %1066
  %1068 = vrot.lane.b32.xlu0 %v998, 19
  %v1069 = vpop.permute.xlu0 %1068
  %1070 = vrot.lane.b32.xlu0 %v999, 19
  %v1071 = vpop.permute.xlu0 %1070
  %v1072 = vsel %vm271, %v1033, %v1035
  %v1073 = vsel %vm271, %v1035, %v1037
  %v1074 = vsel %vm271, %v1037, %v1039
  %v1075 = vsel %vm271, %v1041, %v1043
  %v1076 = vsel %vm271, %v1043, %v1045
  %v1077 = vsel %vm271, %v1045, %v1047
  %v1078 = vsel %vm271, %v1049, %v1051
  %v1079 = vsel %vm271, %v1051, %v1053
  %v1080 = vsel %vm271, %v1053, %v1055
  %v1081 = vsel %vm271, %v1057, %v1059
  %v1082 = vsel %vm271, %v1059, %v1061
  %v1083 = vsel %vm271, %v1061, %v1063
  %v1084 = vsel %vm271, %v1065, %v1067
  %v1085 = vsel %vm271, %v1067, %v1069
  %v1086 = vsel %vm271, %v1069, %v1071
  %v1100 = vsel %vm299, %v52, 0
  %v1102 = vsel %vm198, %v1084, 0
  %v1104 = vsel %vm198, %v1085, 0
  %v1106 = vsel %vm198, %v1086, 0
  %1108 = vmatprep.subr.mxu0 0.0
  %1109 = vmatpush1.msra.mxu0 0.0
  %1110 = vmatprep.subr.mxu0 0.0
  %1111 = vmatpush1.msra.mxu0 0.0
  %1112 = vmatprep.subr.mxu0 0.0
  %1113 = vmatpush1.msra.mxu0 0.0
  %1114 = vmatprep.subr.mxu0 0.0
  %1115 = vmatpush1.msra.mxu0 0.0
  %1116 = vmatprep.subr.mxu0 0.0
  %1117 = vmatpush1.msra.mxu0 0.0
  %1118 = vmatprep.subr.mxu0 0.0
  %1119 = vmatpush1.msra.mxu0 0.0
  %1120 = vmatprep.subr.mxu0 0.0
  %1121 = vmatpush1.msra.mxu0 0.0
  %1122 = vmatprep.subr.mxu0 0.0
  %1123 = vmatpush1.msra.mxu0 0.0
  %1124 = vmatprep.subr.mxu0 0.0
  %1125 = vmatpush1.msra.mxu0 0.0
  %1126 = vmatprep.subr.mxu0 0.0
  %1127 = vmatpush1.msra.mxu0 0.0
  %1128 = vmatprep.subr.mxu0 0.0
  %1129 = vmatpush1.msra.mxu0 0.0
  %1130 = vmatprep.subr.mxu0 %v1104
  %1131 = vmatpush1.msra.mxu0 %v1102
  %1132 = vmatprep.subr.mxu0 %v1082
  %1133 = vmatpush1.msra.mxu0 %v1081
  %1134 = vmatprep.subr.mxu0 %v1079
  %1135 = vmatpush1.msra.mxu0 %v1078
  %1136 = vmatprep.subr.mxu0 %v1076
  %1137 = vmatpush1.msra.mxu0 %v1075
  %1138 = vmatprep.subr.mxu0 %v1073
  %1139 = vmatpush1.msra.mxu0 %v1072
  %1140 = vmatprep.subr.mxu0 0.0
  %1141 = vmatpush2.msra.mxu0 0.0
  %1142 = vmatprep.subr.mxu0 0.0
  %1143 = vmatpush2.msra.mxu0 0.0
  %1144 = vmatprep.subr.mxu0 0.0
  %1145 = vmatpush2.msra.mxu0 0.0
  %1146 = vmatprep.subr.mxu0 0.0
  %1147 = vmatpush2.msra.mxu0 0.0
  %1148 = vmatprep.subr.mxu0 0.0
  %1149 = vmatpush2.msra.mxu0 0.0
  %1150 = vmatprep.subr.mxu0 0.0
  %1151 = vmatpush2.msra.mxu0 0.0
  %1152 = vmatprep.subr.mxu0 0.0
  %1153 = vmatpush2.msra.mxu0 0.0
  %1154 = vmatprep.subr.mxu0 0.0
  %1155 = vmatpush2.msra.mxu0 0.0
  %1156 = vmatprep.subr.mxu0 0.0
  %1157 = vmatpush2.msra.mxu0 0.0
  %1158 = vmatprep.subr.mxu0 0.0
  %1159 = vmatpush2.msra.mxu0 0.0
  %1160 = vmatprep.subr.mxu0 0.0
  %1161 = vmatpush2.msra.mxu0 0.0
  %1162 = vmatprep.subr.mxu0 0.0
  %1163 = vmatpush2.msra.mxu0 0.0
  %1164 = vmatprep.subr.mxu0 0.0
  %1165 = vmatpush2.msra.mxu0 0.0
  %1166 = vmatprep.subr.mxu0 0.0
  %1167 = vmatpush2.msra.mxu0 0.0
  %1168 = vmatprep.subr.mxu0 0.0
  %1169 = vmatpush2.msra.mxu0 0.0
  %1170 = vmatprep.subr.mxu0 0.0
  %1171 = vmatpush2.msra.mxu0 0.0
  %1172 = vmatprep.mubr.f32.mxu0 0.0
  %1173 = vmatmul.mubr.f32.gmra.mxu0 %v1100
  %v1174 = vpop.f32.mrf.mxu0
  %v1175 = vadd.f32 0.0, %v1174
  %v1176 = vpop.f32.mrf.mxu0
  %v1177 = vadd.f32 0.0, %v1176
  %1178 = vdwg.mxu0
  %1179 = vmatprep.subr.mxu0 0.0
  %1180 = vmatpush1.msra.mxu0 0.0
  %1181 = vmatprep.subr.mxu0 0.0
  %1182 = vmatpush1.msra.mxu0 0.0
  %1183 = vmatprep.subr.mxu0 0.0
  %1184 = vmatpush1.msra.mxu0 0.0
  %1185 = vmatprep.subr.mxu0 0.0
  %1186 = vmatpush1.msra.mxu0 0.0
  %1187 = vmatprep.subr.mxu0 0.0
  %1188 = vmatpush1.msra.mxu0 0.0
  %1189 = vmatprep.subr.mxu0 0.0
  %1190 = vmatpush1.msra.mxu0 0.0
  %1191 = vmatprep.subr.mxu0 0.0
  %1192 = vmatpush1.msra.mxu0 0.0
  %1193 = vmatprep.subr.mxu0 0.0
  %1194 = vmatpush1.msra.mxu0 0.0
  %1195 = vmatprep.subr.mxu0 0.0
  %1196 = vmatpush1.msra.mxu0 0.0
  %1197 = vmatprep.subr.mxu0 0.0
  %1198 = vmatpush1.msra.mxu0 0.0
  %1199 = vmatprep.subr.mxu0 0.0
  %1200 = vmatpush1.msra.mxu0 0.0
  %1201 = vmatprep.subr.mxu0 0.0
  %1202 = vmatpush1.msra.mxu0 %v1106
  %1203 = vmatprep.subr.mxu0 0.0
  %1204 = vmatpush1.msra.mxu0 %v1083
  %1205 = vmatprep.subr.mxu0 0.0
  %1206 = vmatpush1.msra.mxu0 %v1080
  %1207 = vmatprep.subr.mxu0 0.0
  %1208 = vmatpush1.msra.mxu0 %v1077
  %1209 = vmatprep.subr.mxu0 0.0
  %1210 = vmatpush1.msra.mxu0 %v1074
  %1211 = vmatprep.subr.mxu0 0.0
  %1212 = vmatpush2.msra.mxu0 0.0
  %1213 = vmatprep.subr.mxu0 0.0
  %1214 = vmatpush2.msra.mxu0 0.0
  %1215 = vmatprep.subr.mxu0 0.0
  %1216 = vmatpush2.msra.mxu0 0.0
  %1217 = vmatprep.subr.mxu0 0.0
  %1218 = vmatpush2.msra.mxu0 0.0
  %1219 = vmatprep.subr.mxu0 0.0
  %1220 = vmatpush2.msra.mxu0 0.0
  %1221 = vmatprep.subr.mxu0 0.0
  %1222 = vmatpush2.msra.mxu0 0.0
  %1223 = vmatprep.subr.mxu0 0.0
  %1224 = vmatpush2.msra.mxu0 0.0
  %1225 = vmatprep.subr.mxu0 0.0
  %1226 = vmatpush2.msra.mxu0 0.0
  %1227 = vmatprep.subr.mxu0 0.0
  %1228 = vmatpush2.msra.mxu0 0.0
  %1229 = vmatprep.subr.mxu0 0.0
  %1230 = vmatpush2.msra.mxu0 0.0
  %1231 = vmatprep.subr.mxu0 0.0
  %1232 = vmatpush2.msra.mxu0 0.0
  %1233 = vmatprep.subr.mxu0 0.0
  %1234 = vmatpush2.msra.mxu0 0.0
  %1235 = vmatprep.subr.mxu0 0.0
  %1236 = vmatpush2.msra.mxu0 0.0
  %1237 = vmatprep.subr.mxu0 0.0
  %1238 = vmatpush2.msra.mxu0 0.0
  %1239 = vmatprep.subr.mxu0 0.0
  %1240 = vmatpush2.msra.mxu0 0.0
  %1241 = vmatprep.subr.mxu0 0.0
  %1242 = vmatpush2.msra.mxu0 0.0
  %1243 = vmatprep.mubr.f32.mxu0 0.0
  %1244 = vmatmul.mubr.f32.gmra.mxu0 %v1100
  %v1245 = vpop.f32.mrf.mxu0
  %v1246 = vadd.f32 0.0, %v1245
  %v1247 = vpop.f32.mrf.mxu0
  %1248 = vdwg.mxu0
  %v1249 = vld [vmem:[#allocation2] sm:$0xf0]
  %v1250 = vld [vmem:[#allocation2 + $0x8] sm:$0xf0]
  %v1251 = vld [vmem:[#allocation2 + $0x10] sm:$0xf0]
  %v1252 = vld [vmem:[#allocation2 + $0x18] sm:$0xf0]
  %v1253 = vld [vmem:[#allocation2 + $0x8] sm:$0xf0]
  %v1254 = vld [vmem:[#allocation2 + $0x10] sm:$0xf0]
  %v1255 = vld [vmem:[#allocation2 + $0x18] sm:$0xf0]
  %v1256 = vld [vmem:[#allocation2 + $0x20] sm:$0xf0]
  %v1261 = vrot.slane %v1249, 4
  %v1262 = vrot.slane %v1250, 4
  %v1263 = vrot.slane %v1251, 4
  %v1264 = vrot.slane %v1252, 4
  %1269 = vrot.lane.b32.xlu0 %v1249, 127
  %v1270 = vpop.permute.xlu0 %1269
  %1271 = vrot.lane.b32.xlu0 %v1250, 127
  %v1272 = vpop.permute.xlu0 %1271
  %1273 = vrot.lane.b32.xlu0 %v1251, 127
  %v1274 = vpop.permute.xlu0 %1273
  %1275 = vrot.lane.b32.xlu0 %v1252, 127
  %v1276 = vpop.permute.xlu0 %1275
  %v1277 = vsel %vm77, %v1270, %v1272
  %v1278 = vsel %vm77, %v1272, %v1274
  %v1279 = vsel %vm77, %v1274, %v1276
  %1284 = vrot.lane.b32.xlu0 %v1261, 126
  %v1285 = vpop.permute.xlu0 %1284
  %1286 = vrot.lane.b32.xlu0 %v1262, 126
  %v1287 = vpop.permute.xlu0 %1286
  %1288 = vrot.lane.b32.xlu0 %v1263, 126
  %v1289 = vpop.permute.xlu0 %1288
  %1290 = vrot.lane.b32.xlu0 %v1264, 126
  %v1291 = vpop.permute.xlu0 %1290
  %v1292 = vsel %vm93, %v1285, %v1287
  %v1293 = vsel %vm93, %v1287, %v1289
  %v1294 = vsel %vm93, %v1289, %v1291
  %1299 = vrot.lane.b32.xlu0 %v1249, 110
  %v1300 = vpop.permute.xlu0 %1299
  %1301 = vrot.lane.b32.xlu0 %v1250, 110
  %v1302 = vpop.permute.xlu0 %1301
  %1303 = vrot.lane.b32.xlu0 %v1251, 110
  %v1304 = vpop.permute.xlu0 %1303
  %1305 = vrot.lane.b32.xlu0 %v1252, 110
  %v1306 = vpop.permute.xlu0 %1305
  %v1307 = vsel %vm109, %v1300, %v1302
  %v1308 = vsel %vm109, %v1302, %v1304
  %v1309 = vsel %vm109, %v1304, %v1306
  %1314 = vrot.lane.b32.xlu0 %v1262, 109
  %v1315 = vpop.permute.xlu0 %1314
  %1316 = vrot.lane.b32.xlu0 %v1263, 109
  %v1317 = vpop.permute.xlu0 %1316
  %1318 = vrot.lane.b32.xlu0 %v1264, 109
  %v1319 = vpop.permute.xlu0 %1318
  %v1320 = vsel %vm123, %v1315, %v1317
  %v1321 = vsel %vm123, %v1317, %v1319
  %1330 = vrot.lane.b32.xlu0 %v1253, 108
  %v1331 = vpop.permute.xlu0 %1330
  %1332 = vrot.lane.b32.xlu0 %v1254, 108
  %v1333 = vpop.permute.xlu0 %1332
  %1334 = vrot.lane.b32.xlu0 %v1255, 108
  %v1335 = vpop.permute.xlu0 %1334
  %1336 = vrot.lane.b32.xlu0 %v1256, 108
  %v1337 = vpop.permute.xlu0 %1336
  %v1338 = vsel %vm146, %v1331, %v1333
  %v1339 = vsel %vm146, %v1333, %v1335
  %v1340 = vsel %vm146, %v1335, %v1337
  %v1345 = vrot.slane %v1253, 4
  %v1346 = vrot.slane %v1254, 4
  %v1347 = vrot.slane %v1255, 4
  %v1348 = vrot.slane %v1256, 4
  %1349 = vrot.lane.b32.xlu0 %v1345, 92
  %v1350 = vpop.permute.xlu0 %1349
  %1351 = vrot.lane.b32.xlu0 %v1346, 92
  %v1352 = vpop.permute.xlu0 %1351
  %1353 = vrot.lane.b32.xlu0 %v1347, 92
  %v1354 = vpop.permute.xlu0 %1353
  %1355 = vrot.lane.b32.xlu0 %v1348, 92
  %v1356 = vpop.permute.xlu0 %1355
  %v1357 = vsel %vm162, %v1350, %v1352
  %v1358 = vsel %vm162, %v1352, %v1354
  %v1359 = vsel %vm162, %v1354, %v1356
  %1364 = vrot.lane.b32.xlu0 %v1253, 91
  %v1365 = vpop.permute.xlu0 %1364
  %1366 = vrot.lane.b32.xlu0 %v1254, 91
  %v1367 = vpop.permute.xlu0 %1366
  %1368 = vrot.lane.b32.xlu0 %v1255, 91
  %v1369 = vpop.permute.xlu0 %1368
  %1370 = vrot.lane.b32.xlu0 %v1256, 91
  %v1371 = vpop.permute.xlu0 %1370
  %v1372 = vsel %vm178, %v1365, %v1367
  %v1373 = vsel %vm178, %v1367, %v1369
  %v1374 = vsel %vm178, %v1369, %v1371
  %1379 = vrot.lane.b32.xlu0 %v1345, 90
  %v1380 = vpop.permute.xlu0 %1379
  %1381 = vrot.lane.b32.xlu0 %v1346, 90
  %v1382 = vpop.permute.xlu0 %1381
  %1383 = vrot.lane.b32.xlu0 %v1347, 90
  %v1384 = vpop.permute.xlu0 %1383
  %1385 = vrot.lane.b32.xlu0 %v1348, 90
  %v1386 = vpop.permute.xlu0 %1385
  %v1387 = vsel %vm194, %v1380, %v1382
  %v1388 = vsel %vm194, %v1382, %v1384
  %v1389 = vsel %vm194, %v1384, %v1386
  %v1390 = vsel %vm198, %v1261, %v1277
  %v1391 = vsel %vm198, %v1262, %v1278
  %v1392 = vsel %vm198, %v1263, %v1279
  %v1393 = vsel %vm198, %v1264, %v1276
  %v1394 = vsel %vm198, %v1292, %v1307
  %v1395 = vsel %vm198, %v1293, %v1308
  %v1396 = vsel %vm198, %v1294, %v1309
  %v1397 = vsel %vm198, %v1291, %v1306
  %v1398 = vsel %vm198, %v1315, %v1331
  %v1399 = vsel %vm198, %v1320, %v1338
  %v1400 = vsel %vm198, %v1321, %v1339
  %v1401 = vsel %vm198, %v1319, %v1340
  %v1402 = vsel %vm198, %v1350, %v1365
  %v1403 = vsel %vm198, %v1357, %v1372
  %v1404 = vsel %vm198, %v1358, %v1373
  %v1405 = vsel %vm198, %v1359, %v1374
  %1422 = vrot.lane.b32.xlu0 %v1390, 19
  %v1423 = vpop.permute.xlu0 %1422
  %1424 = vrot.lane.b32.xlu0 %v1391, 19
  %v1425 = vpop.permute.xlu0 %1424
  %1426 = vrot.lane.b32.xlu0 %v1392, 19
  %v1427 = vpop.permute.xlu0 %1426
  %1428 = vrot.lane.b32.xlu0 %v1393, 19
  %v1429 = vpop.permute.xlu0 %1428
  %1430 = vrot.lane.b32.xlu0 %v1394, 19
  %v1431 = vpop.permute.xlu0 %1430
  %1432 = vrot.lane.b32.xlu0 %v1395, 19
  %v1433 = vpop.permute.xlu0 %1432
  %1434 = vrot.lane.b32.xlu0 %v1396, 19
  %v1435 = vpop.permute.xlu0 %1434
  %1436 = vrot.lane.b32.xlu0 %v1397, 19
  %v1437 = vpop.permute.xlu0 %1436
  %1438 = vrot.lane.b32.xlu0 %v1398, 19
  %v1439 = vpop.permute.xlu0 %1438
  %1440 = vrot.lane.b32.xlu0 %v1399, 19
  %v1441 = vpop.permute.xlu0 %1440
  %1442 = vrot.lane.b32.xlu0 %v1400, 19
  %v1443 = vpop.permute.xlu0 %1442
  %1444 = vrot.lane.b32.xlu0 %v1401, 19
  %v1445 = vpop.permute.xlu0 %1444
  %1446 = vrot.lane.b32.xlu0 %v1402, 19
  %v1447 = vpop.permute.xlu0 %1446
  %1448 = vrot.lane.b32.xlu0 %v1403, 19
  %v1449 = vpop.permute.xlu0 %1448
  %1450 = vrot.lane.b32.xlu0 %v1404, 19
  %v1451 = vpop.permute.xlu0 %1450
  %1452 = vrot.lane.b32.xlu0 %v1405, 19
  %v1453 = vpop.permute.xlu0 %1452
  %1454 = vrot.lane.b32.xlu0 %v1380, 19
  %v1455 = vpop.permute.xlu0 %1454
  %1456 = vrot.lane.b32.xlu0 %v1387, 19
  %v1457 = vpop.permute.xlu0 %1456
  %1458 = vrot.lane.b32.xlu0 %v1388, 19
  %v1459 = vpop.permute.xlu0 %1458
  %1460 = vrot.lane.b32.xlu0 %v1389, 19
  %v1461 = vpop.permute.xlu0 %1460
  %v1462 = vsel %vm271, %v1423, %v1425
  %v1463 = vsel %vm271, %v1425, %v1427
  %v1464 = vsel %vm271, %v1427, %v1429
  %v1465 = vsel %vm271, %v1431, %v1433
  %v1466 = vsel %vm271, %v1433, %v1435
  %v1467 = vsel %vm271, %v1435, %v1437
  %v1468 = vsel %vm271, %v1439, %v1441
  %v1469 = vsel %vm271, %v1441, %v1443
  %v1470 = vsel %vm271, %v1443, %v1445
  %v1471 = vsel %vm271, %v1447, %v1449
  %v1472 = vsel %vm271, %v1449, %v1451
  %v1473 = vsel %vm271, %v1451, %v1453
  %v1474 = vsel %vm271, %v1455, %v1457
  %v1475 = vsel %vm271, %v1457, %v1459
  %v1476 = vsel %vm271, %v1459, %v1461
  %v1489 = vsel %vm198, %v1474, 0
  %v1491 = vsel %vm198, %v1475, 0
  %v1493 = vsel %vm198, %v1476, 0
  %1495 = vmatprep.subr.mxu0 0.0
  %1496 = vmatpush1.msra.mxu0 0.0
  %1497 = vmatprep.subr.mxu0 0.0
  %1498 = vmatpush1.msra.mxu0 0.0
  %1499 = vmatprep.subr.mxu0 0.0
  %1500 = vmatpush1.msra.mxu0 0.0
  %1501 = vmatprep.subr.mxu0 0.0
  %1502 = vmatpush1.msra.mxu0 0.0
  %1503 = vmatprep.subr.mxu0 0.0
  %1504 = vmatpush1.msra.mxu0 0.0
  %1505 = vmatprep.subr.mxu0 0.0
  %1506 = vmatpush1.msra.mxu0 0.0
  %1507 = vmatprep.subr.mxu0 0.0
  %1508 = vmatpush1.msra.mxu0 0.0
  %1509 = vmatprep.subr.mxu0 0.0
  %1510 = vmatpush1.msra.mxu0 0.0
  %1511 = vmatprep.subr.mxu0 0.0
  %1512 = vmatpush1.msra.mxu0 0.0
  %1513 = vmatprep.subr.mxu0 0.0
  %1514 = vmatpush1.msra.mxu0 0.0
  %1515 = vmatprep.subr.mxu0 0.0
  %1516 = vmatpush1.msra.mxu0 0.0
  %1517 = vmatprep.subr.mxu0 %v1491
  %1518 = vmatpush1.msra.mxu0 %v1489
  %1519 = vmatprep.subr.mxu0 %v1472
  %1520 = vmatpush1.msra.mxu0 %v1471
  %1521 = vmatprep.subr.mxu0 %v1469
  %1522 = vmatpush1.msra.mxu0 %v1468
  %1523 = vmatprep.subr.mxu0 %v1466
  %1524 = vmatpush1.msra.mxu0 %v1465
  %1525 = vmatprep.subr.mxu0 %v1463
  %1526 = vmatpush1.msra.mxu0 %v1462
  %1527 = vmatprep.subr.mxu0 0.0
  %1528 = vmatpush2.msra.mxu0 0.0
  %1529 = vmatprep.subr.mxu0 0.0
  %1530 = vmatpush2.msra.mxu0 0.0
  %1531 = vmatprep.subr.mxu0 0.0
  %1532 = vmatpush2.msra.mxu0 0.0
  %1533 = vmatprep.subr.mxu0 0.0
  %1534 = vmatpush2.msra.mxu0 0.0
  %1535 = vmatprep.subr.mxu0 0.0
  %1536 = vmatpush2.msra.mxu0 0.0
  %1537 = vmatprep.subr.mxu0 0.0
  %1538 = vmatpush2.msra.mxu0 0.0
  %1539 = vmatprep.subr.mxu0 0.0
  %1540 = vmatpush2.msra.mxu0 0.0
  %1541 = vmatprep.subr.mxu0 0.0
  %1542 = vmatpush2.msra.mxu0 0.0
  %1543 = vmatprep.subr.mxu0 0.0
  %1544 = vmatpush2.msra.mxu0 0.0
  %1545 = vmatprep.subr.mxu0 0.0
  %1546 = vmatpush2.msra.mxu0 0.0
  %1547 = vmatprep.subr.mxu0 0.0
  %1548 = vmatpush2.msra.mxu0 0.0
  %1549 = vmatprep.subr.mxu0 0.0
  %1550 = vmatpush2.msra.mxu0 0.0
  %1551 = vmatprep.subr.mxu0 0.0
  %1552 = vmatpush2.msra.mxu0 0.0
  %1553 = vmatprep.subr.mxu0 0.0
  %1554 = vmatpush2.msra.mxu0 0.0
  %1555 = vmatprep.subr.mxu0 0.0
  %1556 = vmatpush2.msra.mxu0 0.0
  %1557 = vmatprep.subr.mxu0 0.0
  %1558 = vmatpush2.msra.mxu0 0.0
  %1559 = vmatprep.mubr.f32.mxu0 0.0
  %1560 = vmatmul.mubr.f32.gmra.mxu0 %v1100
  %v1561 = vpop.f32.mrf.mxu0
  %v1562 = vadd.f32 0.0, %v1561
  %v1563 = vpop.f32.mrf.mxu0
  %v1564 = vadd.f32 0.0, %v1563
  %1565 = vdwg.mxu0
  %1566 = vmatprep.subr.mxu0 0.0
  %1567 = vmatpush1.msra.mxu0 0.0
  %1568 = vmatprep.subr.mxu0 0.0
  %1569 = vmatpush1.msra.mxu0 0.0
  %1570 = vmatprep.subr.mxu0 0.0
  %1571 = vmatpush1.msra.mxu0 0.0
  %1572 = vmatprep.subr.mxu0 0.0
  %1573 = vmatpush1.msra.mxu0 0.0
  %1574 = vmatprep.subr.mxu0 0.0
  %1575 = vmatpush1.msra.mxu0 0.0
  %1576 = vmatprep.subr.mxu0 0.0
  %1577 = vmatpush1.msra.mxu0 0.0
  %1578 = vmatprep.subr.mxu0 0.0
  %1579 = vmatpush1.msra.mxu0 0.0
  %1580 = vmatprep.subr.mxu0 0.0
  %1581 = vmatpush1.msra.mxu0 0.0
  %1582 = vmatprep.subr.mxu0 0.0
  %1583 = vmatpush1.msra.mxu0 0.0
  %1584 = vmatprep.subr.mxu0 0.0
  %1585 = vmatpush1.msra.mxu0 0.0
  %1586 = vmatprep.subr.mxu0 0.0
  %1587 = vmatpush1.msra.mxu0 0.0
  %1588 = vmatprep.subr.mxu0 0.0
  %1589 = vmatpush1.msra.mxu0 %v1493
  %1590 = vmatprep.subr.mxu0 0.0
  %1591 = vmatpush1.msra.mxu0 %v1473
  %1592 = vmatprep.subr.mxu0 0.0
  %1593 = vmatpush1.msra.mxu0 %v1470
  %1594 = vmatprep.subr.mxu0 0.0
  %1595 = vmatpush1.msra.mxu0 %v1467
  %1596 = vmatprep.subr.mxu0 0.0
  %1597 = vmatpush1.msra.mxu0 %v1464
  %1598 = vmatprep.subr.mxu0 0.0
  %1599 = vmatpush2.msra.mxu0 0.0
  %1600 = vmatprep.subr.mxu0 0.0
  %1601 = vmatpush2.msra.mxu0 0.0
  %1602 = vmatprep.subr.mxu0 0.0
  %1603 = vmatpush2.msra.mxu0 0.0
  %1604 = vmatprep.subr.mxu0 0.0
  %1605 = vmatpush2.msra.mxu0 0.0
  %1606 = vmatprep.subr.mxu0 0.0
  %1607 = vmatpush2.msra.mxu0 0.0
  %1608 = vmatprep.subr.mxu0 0.0
  %1609 = vmatpush2.msra.mxu0 0.0
  %1610 = vmatprep.subr.mxu0 0.0
  %1611 = vmatpush2.msra.mxu0 0.0
  %1612 = vmatprep.subr.mxu0 0.0
  %1613 = vmatpush2.msra.mxu0 0.0
  %1614 = vmatprep.subr.mxu0 0.0
  %1615 = vmatpush2.msra.mxu0 0.0
  %1616 = vmatprep.subr.mxu0 0.0
  %1617 = vmatpush2.msra.mxu0 0.0
  %1618 = vmatprep.subr.mxu0 0.0
  %1619 = vmatpush2.msra.mxu0 0.0
  %1620 = vmatprep.subr.mxu0 0.0
  %1621 = vmatpush2.msra.mxu0 0.0
  %1622 = vmatprep.subr.mxu0 0.0
  %1623 = vmatpush2.msra.mxu0 0.0
  %1624 = vmatprep.subr.mxu0 0.0
  %1625 = vmatpush2.msra.mxu0 0.0
  %1626 = vmatprep.subr.mxu0 0.0
  %1627 = vmatpush2.msra.mxu0 0.0
  %1628 = vmatprep.subr.mxu0 0.0
  %1629 = vmatpush2.msra.mxu0 0.0
  %1630 = vmatprep.mubr.f32.mxu0 0.0
  %1631 = vmatmul.mubr.f32.gmra.mxu0 %v1100
  %v1632 = vpop.f32.mrf.mxu0
  %v1633 = vadd.f32 0.0, %v1632
  %v1634 = vpop.f32.mrf.mxu0
  %1635 = vdwg.mxu0
  %v1639 = vrot.slane %v1562, 4
  %v1640 = vrot.slane %v1564, 4
  %v1641 = vrot.slane %v1633, 4
  %v1645 = vsel %vm198, %v1175, %v1639
  %v1646 = vsel %vm198, %v1177, %v1640
  %v1647 = vsel %vm198, %v1246, %v1641
  %v1648 = vld [vmem:[%s0 + $0x8] sm:$0xff]
  %v1649 = vld [vmem:[%s0 + $0x10] sm:$0xff]
  %v1650 = vld [vmem:[%s0 + $0x18] sm:$0xff]
  %v1651 = vadd.f32 %v1645, %v1648
  %v1652 = vadd.f32 %v1646, %v1649
  %v1653 = vadd.f32 %v1647, %v1650
  %v1654 = vld [vmem:[%s1] sm:$0xff]
  %v1655 = vld [vmem:[%s1 + $0x8] sm:$0xff]
  %v1656 = vld [vmem:[%s1 + $0x10] sm:$0xff]
  %v1657 = vadd.f32 %v1651, %v1654
  %v1658 = vadd.f32 %v1652, %v1655
  %v1659 = vadd.f32 %v1653, %v1656
  %1660 = vst [vmem:[%s4] sm:$0xff] %v1657
  %1661 = vst [vmem:[%s4 + $0x8] sm:$0xff] %v1658
  %1662 = vst [vmem:[%s4 + $0x10] sm:$0xff] %v1659
  // Predicated region
  $region18: #{resblock_do_fft_bench_forward.3} parent=0 // pred_check
    _
  $region19: #{resblock_do_fft_bench_forward.3} parent=0 // pred_check_branch
    %1664 = sbr.rel (0) target = $region21
  $region20: #{resblock_do_fft_bench_forward.3} parent=0 // pred_region
    _
  $region21: #{resblock_do_fft_bench_forward.3} parent=0 // pred_fallthru
    _
  // Predicated region
  $region22: #{resblock_do_fft_bench_forward.3} parent=0 // pred_check
    _
  $region23: #{resblock_do_fft_bench_forward.3} parent=0 // pred_check_branch
    %1666 = sbr.rel (0) target = $region25
  $region24: #{resblock_do_fft_bench_forward.3} parent=0 // pred_region
    _
  $region25: #{resblock_do_fft_bench_forward.3} parent=0 // pred_fallthru
    _

</llo_original>
